<compile_context>
chip_gen: v7x
topology: tpu7x:2x2x1
jax: 0.10.0
libtpu: 0.0.40
codegen_flags: <defaults>
</compile_context>

<pallas_src>
import functools

import jax
import jax.numpy as jnp
from jax import lax
from jax.experimental import pallas as pl
from jax.experimental.pallas import tpu as pltpu


def _round_up(x, m):
    return (x + m - 1) // m * m


def _leaky_relu(z, slope=0.2):
    # max(z, slope*z) == leaky_relu for slope < 1; single vmax instead of cmp+sel.
    return jnp.maximum(z, slope * z)


def _layernorm(z, gamma, beta, eps, inv_d):
    # Two-pass (reference-matching) form; robust to cancellation at large D.
    mu = jnp.sum(z, axis=-1, keepdims=True) * inv_d
    zc = z - mu
    var = jnp.sum(zc * zc, axis=-1, keepdims=True) * inv_d
    return zc * lax.rsqrt(var + eps) * gamma + beta


def dense_generator_kernel(
    x_ref,                      # (TB, in_pad)           matmul dtype (f32 or bf16)
    w0_ref, w1_ref, w2_ref,     # (in_pad, D), (D, D), (D, D)   matmul dtype
    w3_ref,                     # (D, out_pad)                   matmul dtype
    p_ref,                      # (16, D) f32 packed: b0,g0,be0,b1,g1,be1,b2,g2,be2,pad
    b3_ref,                     # (1, out_pad) f32
    out_ref,                    # (TB, out_pad) f32
    *, eps01, eps2, inv_d,      # static Python floats (trace literals)
):
    wdt = w1_ref.dtype
    p = p_ref[...]
    b0, g0, be0 = p[0:1], p[1:2], p[2:3]
    b1, g1, be1 = p[3:4], p[4:5], p[5:6]
    b2, g2, be2 = p[6:7], p[7:8], p[8:9]

    # Layer 0: dense0 -> leaky_relu -> ln0   (f32 accumulation on the MXU)
    h = jnp.dot(x_ref[...], w0_ref[...], preferred_element_type=jnp.float32) + b0
    h = _layernorm(_leaky_relu(h), g0, be0, eps01, inv_d)

    # Layer 1: dense1 -> leaky_relu -> ln1
    h = jnp.dot(h.astype(wdt), w1_ref[...], preferred_element_type=jnp.float32) + b1
    h = _layernorm(_leaky_relu(h), g1, be1, eps01, inv_d)

    # Layer 2: dense2 -> leaky_relu -> ln2  (eps = layer_dim, per nn.LayerNorm(D, D))
    h = jnp.dot(h.astype(wdt), w2_ref[...], preferred_element_type=jnp.float32) + b2
    h = _layernorm(_leaky_relu(h), g2, be2, eps2, inv_d)

    # Output head: dense3 (zero-padded lane-dense width) -> tanh
    o = jnp.dot(h.astype(wdt), w3_ref[...], preferred_element_type=jnp.float32) + b3_ref[...]
    out_ref[...] = jnp.tanh(o).astype(out_ref.dtype)


def prepare_params(params, *, in_dim, layer_dim, xdim, matmul_dtype=jnp.float32):
    """One-time padding / packing / casting of parameters. Cache the result and
    reuse it across forward calls (avoids per-call pad/concat/cast kernels)."""
    f32 = jnp.float32
    mdt = jnp.dtype(matmul_dtype)
    in_pad = _round_up(max(in_dim, 128), 128)
    out_pad = _round_up(max(xdim, 128), 128)

    w0 = params["w0"].astype(f32)
    if in_pad != in_dim:
        w0 = jnp.zeros((in_pad, layer_dim), f32).at[:in_dim, :].set(w0)
    w3 = jnp.zeros((layer_dim, out_pad), f32).at[:, :xdim].set(params["w3"])
    b3 = jnp.zeros((1, out_pad), f32).at[:, :xdim].set(params["b3"].reshape(1, xdim))

    rows = [params[k].astype(f32).reshape(1, layer_dim)
            for k in ("b0", "g0", "be0", "b1", "g1", "be1", "b2", "g2", "be2")]
    slab = jnp.concatenate(rows + [jnp.zeros((16 - len(rows), layer_dim), f32)], axis=0)

    return {
        "w0": w0.astype(mdt), "w1": params["w1"].astype(mdt),
        "w2": params["w2"].astype(mdt), "w3": w3.astype(mdt),
        "slab": slab, "b3": b3,
        "in_dim": in_dim, "in_pad": in_pad, "layer_dim": layer_dim,
        "xdim": xdim, "out_pad": out_pad, "matmul_dtype": mdt,
    }


def _vmem_cap_bytes():
    """Generation-aware scoped-VMEM cap (v5e/v6e: 128 MiB physical, v7x: 64 MiB)."""
    try:
        info = pltpu.get_tpu_info()
        cap = int(getattr(info, "vmem_capacity_bytes", 0))
        if cap > 0:
            return max(16 << 20, min(100 << 20, cap * 3 // 4))
    except Exception:
        pass
    return 48 << 20  # safe on all of v5e / v6e / v7x


def _vmem_estimate_bytes(TB, in_pad, D, out_pad, wbytes, single_buffered_weights):
    """Buffer-count-accurate VMEM estimate."""
    w_elems = in_pad * D + 2 * D * D + D * out_pad
    resident = wbytes * w_elems + 4 * (16 * D + out_pad)
    if not single_buffered_weights:
        resident *= 2                                          # default double-buffer
    streamed = 2 * (wbytes * TB * in_pad + 4 * TB * out_pad)   # double-buffered x/out
    temps = 4 * TB * (6 * D + 2 * out_pad)                     # f32 intermediates headroom
    return resident + streamed + temps


def _pallas_forward(kernel, xin, prep, TB, Bp, vmem_limit, use_single_buffer):
    in_pad, D, out_pad = prep["in_pad"], prep["layer_dim"], prep["out_pad"]

    def resident(shape):
        # Constant index_map -> no benefit from double-buffering; Buffered(1)
        # halves resident-weight VMEM (matters most on v7x's 64 MiB).
        if use_single_buffer:
            return pl.BlockSpec(shape, lambda i: (0,) * len(shape),
                                pipeline_mode=pl.Buffered(1))
        return pl.BlockSpec(shape, lambda i: (0,) * len(shape))

    return pl.pallas_call(
        kernel,
        out_shape=jax.ShapeDtypeStruct((Bp, out_pad), jnp.float32),
        grid_spec=pltpu.PrefetchScalarGridSpec(
            num_scalar_prefetch=0,
            grid=(Bp // TB,),
            in_specs=[
                pl.BlockSpec((TB, in_pad), lambda i: (i, 0)),   # x: streamed
                resident((in_pad, D)),                          # w0 (K padded to 128)
                resident((D, D)),                               # w1
                resident((D, D)),                               # w2
                resident((D, out_pad)),                         # w3 (lane-dense head)
                resident((16, D)),                              # packed b/gamma/beta
                resident((1, out_pad)),                         # b3 (padded)
            ],
            out_specs=pl.BlockSpec((TB, out_pad), lambda i: (i, 0)),
        ),
        compiler_params=pltpu.CompilerParams(
            dimension_semantics=("parallel",),        # megacore sharding on v7x
            vmem_limit_bytes=vmem_limit,
        ),
    )(xin, prep["w0"], prep["w1"], prep["w2"], prep["w3"], prep["slab"], prep["b3"])


_SINGLE_BUFFER_OK = {"value": True}   # cached across calls


def dense_generator_forward(x, prep, *, batch_tile=512):
    B, in_dim = x.shape
    assert in_dim == prep["in_dim"], "input feature dim mismatch with prepared params"
    D, in_pad, out_pad = prep["layer_dim"], prep["in_pad"], prep["out_pad"]
    xdim, mdt = prep["xdim"], prep["matmul_dtype"]
    wbytes = mdt.itemsize

    # --- batch tile: big tiles for HBM roofline / MXU fill, but >= 2 grid tiles
    #     whenever B allows so both v7x TensorCores get work.
    Bp8 = _round_up(B, 8)
    TB = min(_round_up(max(batch_tile, 8), 8), Bp8)
    if Bp8 > 8 and TB >= Bp8:
        TB = _round_up(max((B + 1) // 2, 8), 8)

    cap = _vmem_cap_bytes()
    while TB > 8 and _vmem_estimate_bytes(TB, in_pad, D, out_pad, wbytes, True) > cap:
        TB = _round_up(TB // 2, 8)
    # TODO(synk): add a weight-tiled (second grid axis over D) fallback for
    # layer_dim so large that even bf16 resident weights exceed the VMEM cap.

    Bp = _round_up(B, TB)

    est = _vmem_estimate_bytes(TB, in_pad, D, out_pad, wbytes, False)  # conservative
    vmem_limit = int(min(cap, max(4 << 20, est + est // 4)))

    # --- input prep: dtype cast + (batch, K) zero-pad fused into one copy, and
    #     skipped entirely when shapes already align.
    xin = x.astype(mdt)
    if Bp != B or in_pad != in_dim:
        xin = jnp.zeros((Bp, in_pad), mdt).at[:B, :in_dim].set(xin)

    kernel = functools.partial(
        dense_generator_kernel,
        eps01=1e-5,                 # nn.LayerNorm default eps
        eps2=float(D),              # nn.LayerNorm(layer_dim, layer_dim) -> eps=layer_dim
        inv_d=1.0 / float(D),
    )

    if _SINGLE_BUFFER_OK["value"]:
        try:
            out = _pallas_forward(kernel, xin, prep, TB, Bp, vmem_limit, True)
        except Exception:
            _SINGLE_BUFFER_OK["value"] = False
            out = _pallas_forward(kernel, xin, prep, TB, Bp, vmem_limit, False)
    else:
        out = _pallas_forward(kernel, xin, prep, TB, Bp, vmem_limit, False)

    if Bp != B or out_pad != xdim:
        out = out[:B, :xdim]
    return out


def init_params(key, in_dim, layer_dim, xdim):
    """Deterministic synthetic init (PyTorch-like uniform fan-in scaling)."""
    ks = jax.random.split(key, 4)

    def linear(k, d_in, d_out):
        bound = 1.0 / jnp.sqrt(d_in)
        kw, kb = jax.random.split(k)
        w = jax.random.uniform(kw, (d_in, d_out), jnp.float32, -bound, bound)
        b = jax.random.uniform(kb, (1, d_out), jnp.float32, -bound, bound)
        return w, b

    w0, b0 = linear(ks[0], in_dim, layer_dim)
    w1, b1 = linear(ks[1], layer_dim, layer_dim)
    w2, b2 = linear(ks[2], layer_dim, layer_dim)
    w3, b3 = linear(ks[3], layer_dim, xdim)

    ones = jnp.ones((1, layer_dim), jnp.float32)
    zeros = jnp.zeros((1, layer_dim), jnp.float32)

    return {
        "w0": w0, "b0": b0, "g0": ones, "be0": zeros,
        "w1": w1, "b1": b1, "g1": ones, "be1": zeros,
        "w2": w2, "b2": b2, "g2": ones, "be2": zeros,
        "w3": w3, "b3": b3,
    }


def reference_forward(x, params, *, layer_dim):
    """Pure-JAX reference of the PyTorch forward (for correctness check)."""
    hi = lax.Precision.HIGHEST

    def layer(h, w, b, g, be, eps):
        z = jnp.dot(h, w, precision=hi) + b
        z = jnp.where(z >= 0, z, 0.2 * z)
        mu = jnp.mean(z, -1, keepdims=True)
        var = jnp.mean((z - mu) ** 2, -1, keepdims=True)
        return (z - mu) / jnp.sqrt(var + eps) * g + be

    h = layer(x, params["w0"], params["b0"], params["g0"], params["be0"], 1e-5)
    h = layer(h, params["w1"], params["b1"], params["g1"], params["be1"], 1e-5)
    h = layer(h, params["w2"], params["b2"], params["g2"], params["be2"],
              float(layer_dim))
    return jnp.tanh(jnp.dot(h, params["w3"], precision=hi) + params["b3"])


if __name__ == "__main__":
    # Small shapes consistent with the module's forward: X is (batch, in_features).
    B, IN_DIM, LAYER_DIM, XDIM = 16, 32, 128, 16

    key = jax.random.PRNGKey(0)
    k_x, k_p = jax.random.split(key)
    x = jax.random.normal(k_x, (B, IN_DIM), jnp.float32)
    params = init_params(k_p, IN_DIM, LAYER_DIM, XDIM)
    ref = reference_forward(x, params, layer_dim=LAYER_DIM)

    # f32-operand path (strict numerical check).  With B=16 the >=2-tile rule
    # gives TB=8, grid=(2,), exercising the parallel batch grid.
    prep_f32 = prepare_params(params, in_dim=IN_DIM, layer_dim=LAYER_DIM,
                              xdim=XDIM, matmul_dtype=jnp.float32)
    out_f32 = jax.block_until_ready(dense_generator_forward(x, prep_f32))
    assert out_f32.shape == (B, XDIM)
    assert jnp.allclose(out_f32, ref, atol=2e-3, rtol=2e-3), "f32 mismatch vs reference"

    # bf16-operand path (MXU-native on v6e/v7x; f32 accumulation + f32 LN/tanh).
    prep_bf16 = prepare_params(params, in_dim=IN_DIM, layer_dim=LAYER_DIM,
                               xdim=XDIM, matmul_dtype=jnp.bfloat16)
    out_bf16 = jax.block_until_ready(dense_generator_forward(x, prep_bf16))
    assert out_bf16.shape == (B, XDIM)
    assert jnp.allclose(out_bf16, ref, atol=2e-2, rtol=2e-2), "bf16 mismatch vs reference"

    print("KERNEL_OK")
</pallas_src>

<mosaic_0001>
module attributes {stable_mosaic.version = 11 : i64} {
  func.func @dense_generator_kernel(%arg0: i32, %arg1: memref<8x128xf32, #tpu.memory_space<vmem>>, %arg2: memref<128x128xf32, #tpu.memory_space<vmem>>, %arg3: memref<128x128xf32, #tpu.memory_space<vmem>>, %arg4: memref<128x128xf32, #tpu.memory_space<vmem>>, %arg5: memref<128x128xf32, #tpu.memory_space<vmem>>, %arg6: memref<16x128xf32, #tpu.memory_space<vmem>>, %arg7: memref<1x128xf32, #tpu.memory_space<vmem>>, %arg8: memref<8x128xf32, #tpu.memory_space<vmem>>) attributes {dimension_semantics = [#tpu.dimension_semantics<parallel>], iteration_bounds = array<i64: 2>, scalar_prefetch = 0 : i64, scratch_operands = 0 : i64, tpu.core_type = #tpu.core_type<tc>, window_params = [{transform_indices = @transform_0, window_bounds = array<i64: 8, 128>}, {pipeline_mode = #tpu.pipeline_mode<synchronous>, transform_indices = @transform_1, window_bounds = array<i64: 128, 128>}, {pipeline_mode = #tpu.pipeline_mode<synchronous>, transform_indices = @transform_2, window_bounds = array<i64: 128, 128>}, {pipeline_mode = #tpu.pipeline_mode<synchronous>, transform_indices = @transform_3, window_bounds = array<i64: 128, 128>}, {pipeline_mode = #tpu.pipeline_mode<synchronous>, transform_indices = @transform_4, window_bounds = array<i64: 128, 128>}, {pipeline_mode = #tpu.pipeline_mode<synchronous>, transform_indices = @transform_5, window_bounds = array<i64: 16, 128>}, {pipeline_mode = #tpu.pipeline_mode<synchronous>, transform_indices = @transform_6, window_bounds = array<i64: 1, 128>}, {transform_indices = @transform_7, window_bounds = array<i64: 8, 128>}]} {
    %c0 = arith.constant 0 : index
    %c0_0 = arith.constant 0 : index
    %0 = vector.load %arg6[%c0, %c0_0] : memref<16x128xf32, #tpu.memory_space<vmem>>, vector<16x128xf32>
    %1 = vector.extract_strided_slice %0 {offsets = [0, 0], sizes = [1, 128], strides = [1, 1]} : vector<16x128xf32> to vector<1x128xf32>
    %2 = vector.extract_strided_slice %0 {offsets = [1, 0], sizes = [1, 128], strides = [1, 1]} : vector<16x128xf32> to vector<1x128xf32>
    %3 = vector.extract_strided_slice %0 {offsets = [2, 0], sizes = [1, 128], strides = [1, 1]} : vector<16x128xf32> to vector<1x128xf32>
    %4 = vector.extract_strided_slice %0 {offsets = [3, 0], sizes = [1, 128], strides = [1, 1]} : vector<16x128xf32> to vector<1x128xf32>
    %5 = vector.extract_strided_slice %0 {offsets = [4, 0], sizes = [1, 128], strides = [1, 1]} : vector<16x128xf32> to vector<1x128xf32>
    %6 = vector.extract_strided_slice %0 {offsets = [5, 0], sizes = [1, 128], strides = [1, 1]} : vector<16x128xf32> to vector<1x128xf32>
    %7 = vector.extract_strided_slice %0 {offsets = [6, 0], sizes = [1, 128], strides = [1, 1]} : vector<16x128xf32> to vector<1x128xf32>
    %8 = vector.extract_strided_slice %0 {offsets = [7, 0], sizes = [1, 128], strides = [1, 1]} : vector<16x128xf32> to vector<1x128xf32>
    %9 = vector.extract_strided_slice %0 {offsets = [8, 0], sizes = [1, 128], strides = [1, 1]} : vector<16x128xf32> to vector<1x128xf32>
    %c0_1 = arith.constant 0 : index
    %c0_2 = arith.constant 0 : index
    %10 = vector.load %arg1[%c0_1, %c0_2] : memref<8x128xf32, #tpu.memory_space<vmem>>, vector<8x128xf32>
    %c0_3 = arith.constant 0 : index
    %c0_4 = arith.constant 0 : index
    %11 = vector.load %arg2[%c0_3, %c0_4] : memref<128x128xf32, #tpu.memory_space<vmem>>, vector<128x128xf32>
    %cst = arith.constant dense<0.000000e+00> : vector<8x128xf32>
    %12 = tpu.matmul %10, %11, %cst {dimension_numbers = #tpu.dot_dimension_numbers<[1], [0], [0], [1], [0, 0, 1, 1], [], []>} : vector<8x128xf32>, vector<128x128xf32>, vector<8x128xf32> -> vector<8x128xf32>
    %13 = vector.broadcast %1 : vector<1x128xf32> to vector<8x128xf32>
    %14 = arith.addf %12, %13 : vector<8x128xf32>
    %cst_5 = arith.constant 2.000000e-01 : f32
    %15 = vector.broadcast %cst_5 : f32 to vector<8x128xf32>
    %16 = arith.mulf %15, %14 : vector<8x128xf32>
    %17 = arith.maximumf %14, %16 : vector<8x128xf32>
    %cst_6 = arith.constant dense<0.000000e+00> : vector<8xf32>
    %18 = vector.multi_reduction <add>, %17, %cst_6 [1] : vector<8x128xf32> to vector<8xf32>
    %19 = vector.shape_cast %18 : vector<8xf32> to vector<8x1xf32>
    %cst_7 = arith.constant 7.812500e-03 : f32
    %20 = vector.broadcast %cst_7 : f32 to vector<8x1xf32>
    %21 = arith.mulf %19, %20 : vector<8x1xf32>
    %22 = vector.broadcast %21 : vector<8x1xf32> to vector<8x128xf32>
    %23 = arith.subf %17, %22 : vector<8x128xf32>
    %24 = arith.mulf %23, %23 : vector<8x128xf32>
    %cst_8 = arith.constant dense<0.000000e+00> : vector<8xf32>
    %25 = vector.multi_reduction <add>, %24, %cst_8 [1] : vector<8x128xf32> to vector<8xf32>
    %26 = vector.shape_cast %25 : vector<8xf32> to vector<8x1xf32>
    %cst_9 = arith.constant 7.812500e-03 : f32
    %27 = vector.broadcast %cst_9 : f32 to vector<8x1xf32>
    %28 = arith.mulf %26, %27 : vector<8x1xf32>
    %cst_10 = arith.constant 9.99999974E-6 : f32
    %29 = vector.broadcast %cst_10 : f32 to vector<8x1xf32>
    %30 = arith.addf %28, %29 : vector<8x1xf32>
    %31 = math.rsqrt %30 : vector<8x1xf32>
    %32 = vector.broadcast %31 : vector<8x1xf32> to vector<8x128xf32>
    %33 = arith.mulf %23, %32 : vector<8x128xf32>
    %34 = vector.broadcast %2 : vector<1x128xf32> to vector<8x128xf32>
    %35 = arith.mulf %33, %34 : vector<8x128xf32>
    %36 = vector.broadcast %3 : vector<1x128xf32> to vector<8x128xf32>
    %37 = arith.addf %35, %36 : vector<8x128xf32>
    %c0_11 = arith.constant 0 : index
    %c0_12 = arith.constant 0 : index
    %38 = vector.load %arg3[%c0_11, %c0_12] : memref<128x128xf32, #tpu.memory_space<vmem>>, vector<128x128xf32>
    %cst_13 = arith.constant dense<0.000000e+00> : vector<8x128xf32>
    %39 = tpu.matmul %37, %38, %cst_13 {dimension_numbers = #tpu.dot_dimension_numbers<[1], [0], [0], [1], [0, 0, 1, 1], [], []>} : vector<8x128xf32>, vector<128x128xf32>, vector<8x128xf32> -> vector<8x128xf32>
    %40 = vector.broadcast %4 : vector<1x128xf32> to vector<8x128xf32>
    %41 = arith.addf %39, %40 : vector<8x128xf32>
    %cst_14 = arith.constant 2.000000e-01 : f32
    %42 = vector.broadcast %cst_14 : f32 to vector<8x128xf32>
    %43 = arith.mulf %42, %41 : vector<8x128xf32>
    %44 = arith.maximumf %41, %43 : vector<8x128xf32>
    %cst_15 = arith.constant dense<0.000000e+00> : vector<8xf32>
    %45 = vector.multi_reduction <add>, %44, %cst_15 [1] : vector<8x128xf32> to vector<8xf32>
    %46 = vector.shape_cast %45 : vector<8xf32> to vector<8x1xf32>
    %cst_16 = arith.constant 7.812500e-03 : f32
    %47 = vector.broadcast %cst_16 : f32 to vector<8x1xf32>
    %48 = arith.mulf %46, %47 : vector<8x1xf32>
    %49 = vector.broadcast %48 : vector<8x1xf32> to vector<8x128xf32>
    %50 = arith.subf %44, %49 : vector<8x128xf32>
    %51 = arith.mulf %50, %50 : vector<8x128xf32>
    %cst_17 = arith.constant dense<0.000000e+00> : vector<8xf32>
    %52 = vector.multi_reduction <add>, %51, %cst_17 [1] : vector<8x128xf32> to vector<8xf32>
    %53 = vector.shape_cast %52 : vector<8xf32> to vector<8x1xf32>
    %cst_18 = arith.constant 7.812500e-03 : f32
    %54 = vector.broadcast %cst_18 : f32 to vector<8x1xf32>
    %55 = arith.mulf %53, %54 : vector<8x1xf32>
    %cst_19 = arith.constant 9.99999974E-6 : f32
    %56 = vector.broadcast %cst_19 : f32 to vector<8x1xf32>
    %57 = arith.addf %55, %56 : vector<8x1xf32>
    %58 = math.rsqrt %57 : vector<8x1xf32>
    %59 = vector.broadcast %58 : vector<8x1xf32> to vector<8x128xf32>
    %60 = arith.mulf %50, %59 : vector<8x128xf32>
    %61 = vector.broadcast %5 : vector<1x128xf32> to vector<8x128xf32>
    %62 = arith.mulf %60, %61 : vector<8x128xf32>
    %63 = vector.broadcast %6 : vector<1x128xf32> to vector<8x128xf32>
    %64 = arith.addf %62, %63 : vector<8x128xf32>
    %c0_20 = arith.constant 0 : index
    %c0_21 = arith.constant 0 : index
    %65 = vector.load %arg4[%c0_20, %c0_21] : memref<128x128xf32, #tpu.memory_space<vmem>>, vector<128x128xf32>
    %cst_22 = arith.constant dense<0.000000e+00> : vector<8x128xf32>
    %66 = tpu.matmul %64, %65, %cst_22 {dimension_numbers = #tpu.dot_dimension_numbers<[1], [0], [0], [1], [0, 0, 1, 1], [], []>} : vector<8x128xf32>, vector<128x128xf32>, vector<8x128xf32> -> vector<8x128xf32>
    %67 = vector.broadcast %7 : vector<1x128xf32> to vector<8x128xf32>
    %68 = arith.addf %66, %67 : vector<8x128xf32>
    %cst_23 = arith.constant 2.000000e-01 : f32
    %69 = vector.broadcast %cst_23 : f32 to vector<8x128xf32>
    %70 = arith.mulf %69, %68 : vector<8x128xf32>
    %71 = arith.maximumf %68, %70 : vector<8x128xf32>
    %cst_24 = arith.constant dense<0.000000e+00> : vector<8xf32>
    %72 = vector.multi_reduction <add>, %71, %cst_24 [1] : vector<8x128xf32> to vector<8xf32>
    %73 = vector.shape_cast %72 : vector<8xf32> to vector<8x1xf32>
    %cst_25 = arith.constant 7.812500e-03 : f32
    %74 = vector.broadcast %cst_25 : f32 to vector<8x1xf32>
    %75 = arith.mulf %73, %74 : vector<8x1xf32>
    %76 = vector.broadcast %75 : vector<8x1xf32> to vector<8x128xf32>
    %77 = arith.subf %71, %76 : vector<8x128xf32>
    %78 = arith.mulf %77, %77 : vector<8x128xf32>
    %cst_26 = arith.constant dense<0.000000e+00> : vector<8xf32>
    %79 = vector.multi_reduction <add>, %78, %cst_26 [1] : vector<8x128xf32> to vector<8xf32>
    %80 = vector.shape_cast %79 : vector<8xf32> to vector<8x1xf32>
    %cst_27 = arith.constant 7.812500e-03 : f32
    %81 = vector.broadcast %cst_27 : f32 to vector<8x1xf32>
    %82 = arith.mulf %80, %81 : vector<8x1xf32>
    %cst_28 = arith.constant 1.280000e+02 : f32
    %83 = vector.broadcast %cst_28 : f32 to vector<8x1xf32>
    %84 = arith.addf %82, %83 : vector<8x1xf32>
    %85 = math.rsqrt %84 : vector<8x1xf32>
    %86 = vector.broadcast %85 : vector<8x1xf32> to vector<8x128xf32>
    %87 = arith.mulf %77, %86 : vector<8x128xf32>
    %88 = vector.broadcast %8 : vector<1x128xf32> to vector<8x128xf32>
    %89 = arith.mulf %87, %88 : vector<8x128xf32>
    %90 = vector.broadcast %9 : vector<1x128xf32> to vector<8x128xf32>
    %91 = arith.addf %89, %90 : vector<8x128xf32>
    %c0_29 = arith.constant 0 : index
    %c0_30 = arith.constant 0 : index
    %92 = vector.load %arg5[%c0_29, %c0_30] : memref<128x128xf32, #tpu.memory_space<vmem>>, vector<128x128xf32>
    %cst_31 = arith.constant dense<0.000000e+00> : vector<8x128xf32>
    %93 = tpu.matmul %91, %92, %cst_31 {dimension_numbers = #tpu.dot_dimension_numbers<[1], [0], [0], [1], [0, 0, 1, 1], [], []>} : vector<8x128xf32>, vector<128x128xf32>, vector<8x128xf32> -> vector<8x128xf32>
    %c0_32 = arith.constant 0 : index
    %c0_33 = arith.constant 0 : index
    %94 = vector.load %arg7[%c0_32, %c0_33] : memref<1x128xf32, #tpu.memory_space<vmem>>, vector<1x128xf32>
    %95 = vector.broadcast %94 : vector<1x128xf32> to vector<8x128xf32>
    %96 = arith.addf %93, %95 : vector<8x128xf32>
    %97 = math.tanh %96 : vector<8x128xf32>
    %c0_34 = arith.constant 0 : index
    %c0_35 = arith.constant 0 : index
    %98 = vector.load %arg8[%c0_34, %c0_35] : memref<8x128xf32, #tpu.memory_space<vmem>>, vector<8x128xf32>
    tpu.vector_store %arg8[%c0_34, %c0_35], %97 {strides = array<i32>} : memref<8x128xf32, #tpu.memory_space<vmem>>, vector<8x128xf32>,
    return
  }
  func.func @transform_0(%arg0: i32) -> (i32, i32) {
    %c0_i32 = arith.constant 0 : i32
    %c0_i32_0 = arith.constant 0 : i32
    return %arg0, %c0_i32 : i32, i32
  }
  func.func @transform_1(%arg0: i32) -> (i32, i32) {
    %c0_i32 = arith.constant 0 : i32
    %c0_i32_0 = arith.constant 0 : i32
    %c0_i32_1 = arith.constant 0 : i32
    return %c0_i32, %c0_i32_0 : i32, i32
  }
  func.func @transform_2(%arg0: i32) -> (i32, i32) {
    %c0_i32 = arith.constant 0 : i32
    %c0_i32_0 = arith.constant 0 : i32
    %c0_i32_1 = arith.constant 0 : i32
    return %c0_i32, %c0_i32_0 : i32, i32
  }
  func.func @transform_3(%arg0: i32) -> (i32, i32) {
    %c0_i32 = arith.constant 0 : i32
    %c0_i32_0 = arith.constant 0 : i32
    %c0_i32_1 = arith.constant 0 : i32
    return %c0_i32, %c0_i32_0 : i32, i32
  }
  func.func @transform_4(%arg0: i32) -> (i32, i32) {
    %c0_i32 = arith.constant 0 : i32
    %c0_i32_0 = arith.constant 0 : i32
    %c0_i32_1 = arith.constant 0 : i32
    return %c0_i32, %c0_i32_0 : i32, i32
  }
  func.func @transform_5(%arg0: i32) -> (i32, i32) {
    %c0_i32 = arith.constant 0 : i32
    %c0_i32_0 = arith.constant 0 : i32
    %c0_i32_1 = arith.constant 0 : i32
    return %c0_i32, %c0_i32_0 : i32, i32
  }
  func.func @transform_6(%arg0: i32) -> (i32, i32) {
    %c0_i32 = arith.constant 0 : i32
    %c0_i32_0 = arith.constant 0 : i32
    %c0_i32_1 = arith.constant 0 : i32
    return %c0_i32, %c0_i32_0 : i32, i32
  }
  func.func @transform_7(%arg0: i32) -> (i32, i32) {
    %c0_i32 = arith.constant 0 : i32
    %c0_i32_0 = arith.constant 0 : i32
    return %arg0, %c0_i32 : i32, i32
  }
}

module attributes {stable_mosaic.version = 11 : i64} {
  func.func @dense_generator_kernel(%arg0: i32, %arg1: memref<8x128xf32, #tpu.memory_space<vmem>>, %arg2: memref<128x128xf32, #tpu.memory_space<vmem>>, %arg3: memref<128x128xf32, #tpu.memory_space<vmem>>, %arg4: memref<128x128xf32, #tpu.memory_space<vmem>>, %arg5: memref<128x128xf32, #tpu.memory_space<vmem>>, %arg6: memref<16x128xf32, #tpu.memory_space<vmem>>, %arg7: memref<1x128xf32, #tpu.memory_space<vmem>>, %arg8: memref<8x128xf32, #tpu.memory_space<vmem>>) attributes {dimension_semantics = [#tpu.dimension_semantics<parallel>], iteration_bounds = array<i64: 2>, scalar_prefetch = 0 : i64, scratch_operands = 0 : i64, tpu.core_type = #tpu.core_type<tc>, window_params = [{transform_indices = @transform_0, window_bounds = array<i64: 8, 128>}, {pipeline_mode = #tpu.pipeline_mode<synchronous>, transform_indices = @transform_1, window_bounds = array<i64: 128, 128>}, {pipeline_mode = #tpu.pipeline_mode<synchronous>, transform_indices = @transform_2, window_bounds = array<i64: 128, 128>}, {pipeline_mode = #tpu.pipeline_mode<synchronous>, transform_indices = @transform_3, window_bounds = array<i64: 128, 128>}, {pipeline_mode = #tpu.pipeline_mode<synchronous>, transform_indices = @transform_4, window_bounds = array<i64: 128, 128>}, {pipeline_mode = #tpu.pipeline_mode<synchronous>, transform_indices = @transform_5, window_bounds = array<i64: 16, 128>}, {pipeline_mode = #tpu.pipeline_mode<synchronous>, transform_indices = @transform_6, window_bounds = array<i64: 1, 128>}, {transform_indices = @transform_7, window_bounds = array<i64: 8, 128>}]} {
    %c0 = arith.constant 0 : index
    %c0_0 = arith.constant 0 : index
    %0 = vector.load %arg6[%c0, %c0_0] : memref<16x128xf32, #tpu.memory_space<vmem>>, vector<16x128xf32>
    %1 = vector.extract_strided_slice %0 {offsets = [0, 0], sizes = [1, 128], strides = [1, 1]} : vector<16x128xf32> to vector<1x128xf32>
    %2 = vector.extract_strided_slice %0 {offsets = [1, 0], sizes = [1, 128], strides = [1, 1]} : vector<16x128xf32> to vector<1x128xf32>
    %3 = vector.extract_strided_slice %0 {offsets = [2, 0], sizes = [1, 128], strides = [1, 1]} : vector<16x128xf32> to vector<1x128xf32>
    %4 = vector.extract_strided_slice %0 {offsets = [3, 0], sizes = [1, 128], strides = [1, 1]} : vector<16x128xf32> to vector<1x128xf32>
    %5 = vector.extract_strided_slice %0 {offsets = [4, 0], sizes = [1, 128], strides = [1, 1]} : vector<16x128xf32> to vector<1x128xf32>
    %6 = vector.extract_strided_slice %0 {offsets = [5, 0], sizes = [1, 128], strides = [1, 1]} : vector<16x128xf32> to vector<1x128xf32>
    %7 = vector.extract_strided_slice %0 {offsets = [6, 0], sizes = [1, 128], strides = [1, 1]} : vector<16x128xf32> to vector<1x128xf32>
    %8 = vector.extract_strided_slice %0 {offsets = [7, 0], sizes = [1, 128], strides = [1, 1]} : vector<16x128xf32> to vector<1x128xf32>
    %9 = vector.extract_strided_slice %0 {offsets = [8, 0], sizes = [1, 128], strides = [1, 1]} : vector<16x128xf32> to vector<1x128xf32>
    %c0_1 = arith.constant 0 : index
    %c0_2 = arith.constant 0 : index
    %10 = vector.load %arg1[%c0_1, %c0_2] : memref<8x128xf32, #tpu.memory_space<vmem>>, vector<8x128xf32>
    %c0_3 = arith.constant 0 : index
    %c0_4 = arith.constant 0 : index
    %11 = vector.load %arg2[%c0_3, %c0_4] : memref<128x128xf32, #tpu.memory_space<vmem>>, vector<128x128xf32>
    %cst = arith.constant dense<0.000000e+00> : vector<8x128xf32>
    %12 = tpu.matmul %10, %11, %cst {dimension_numbers = #tpu.dot_dimension_numbers<[1], [0], [0], [1], [0, 0, 1, 1], [], []>} : vector<8x128xf32>, vector<128x128xf32>, vector<8x128xf32> -> vector<8x128xf32>
    %13 = vector.broadcast %1 : vector<1x128xf32> to vector<8x128xf32>
    %14 = arith.addf %12, %13 : vector<8x128xf32>
    %cst_5 = arith.constant 2.000000e-01 : f32
    %15 = vector.broadcast %cst_5 : f32 to vector<8x128xf32>
    %16 = arith.mulf %15, %14 : vector<8x128xf32>
    %17 = arith.maximumf %14, %16 : vector<8x128xf32>
    %cst_6 = arith.constant dense<0.000000e+00> : vector<8xf32>
    %18 = vector.multi_reduction <add>, %17, %cst_6 [1] : vector<8x128xf32> to vector<8xf32>
    %19 = vector.shape_cast %18 : vector<8xf32> to vector<8x1xf32>
    %cst_7 = arith.constant 7.812500e-03 : f32
    %20 = vector.broadcast %cst_7 : f32 to vector<8x1xf32>
    %21 = arith.mulf %19, %20 : vector<8x1xf32>
    %22 = vector.broadcast %21 : vector<8x1xf32> to vector<8x128xf32>
    %23 = arith.subf %17, %22 : vector<8x128xf32>
    %24 = arith.mulf %23, %23 : vector<8x128xf32>
    %cst_8 = arith.constant dense<0.000000e+00> : vector<8xf32>
    %25 = vector.multi_reduction <add>, %24, %cst_8 [1] : vector<8x128xf32> to vector<8xf32>
    %26 = vector.shape_cast %25 : vector<8xf32> to vector<8x1xf32>
    %cst_9 = arith.constant 7.812500e-03 : f32
    %27 = vector.broadcast %cst_9 : f32 to vector<8x1xf32>
    %28 = arith.mulf %26, %27 : vector<8x1xf32>
    %cst_10 = arith.constant 9.99999974E-6 : f32
    %29 = vector.broadcast %cst_10 : f32 to vector<8x1xf32>
    %30 = arith.addf %28, %29 : vector<8x1xf32>
    %31 = math.rsqrt %30 : vector<8x1xf32>
    %32 = vector.broadcast %31 : vector<8x1xf32> to vector<8x128xf32>
    %33 = arith.mulf %23, %32 : vector<8x128xf32>
    %34 = vector.broadcast %2 : vector<1x128xf32> to vector<8x128xf32>
    %35 = arith.mulf %33, %34 : vector<8x128xf32>
    %36 = vector.broadcast %3 : vector<1x128xf32> to vector<8x128xf32>
    %37 = arith.addf %35, %36 : vector<8x128xf32>
    %c0_11 = arith.constant 0 : index
    %c0_12 = arith.constant 0 : index
    %38 = vector.load %arg3[%c0_11, %c0_12] : memref<128x128xf32, #tpu.memory_space<vmem>>, vector<128x128xf32>
    %cst_13 = arith.constant dense<0.000000e+00> : vector<8x128xf32>
    %39 = tpu.matmul %37, %38, %cst_13 {dimension_numbers = #tpu.dot_dimension_numbers<[1], [0], [0], [1], [0, 0, 1, 1], [], []>} : vector<8x128xf32>, vector<128x128xf32>, vector<8x128xf32> -> vector<8x128xf32>
    %40 = vector.broadcast %4 : vector<1x128xf32> to vector<8x128xf32>
    %41 = arith.addf %39, %40 : vector<8x128xf32>
    %cst_14 = arith.constant 2.000000e-01 : f32
    %42 = vector.broadcast %cst_14 : f32 to vector<8x128xf32>
    %43 = arith.mulf %42, %41 : vector<8x128xf32>
    %44 = arith.maximumf %41, %43 : vector<8x128xf32>
    %cst_15 = arith.constant dense<0.000000e+00> : vector<8xf32>
    %45 = vector.multi_reduction <add>, %44, %cst_15 [1] : vector<8x128xf32> to vector<8xf32>
    %46 = vector.shape_cast %45 : vector<8xf32> to vector<8x1xf32>
    %cst_16 = arith.constant 7.812500e-03 : f32
    %47 = vector.broadcast %cst_16 : f32 to vector<8x1xf32>
    %48 = arith.mulf %46, %47 : vector<8x1xf32>
    %49 = vector.broadcast %48 : vector<8x1xf32> to vector<8x128xf32>
    %50 = arith.subf %44, %49 : vector<8x128xf32>
    %51 = arith.mulf %50, %50 : vector<8x128xf32>
    %cst_17 = arith.constant dense<0.000000e+00> : vector<8xf32>
    %52 = vector.multi_reduction <add>, %51, %cst_17 [1] : vector<8x128xf32> to vector<8xf32>
    %53 = vector.shape_cast %52 : vector<8xf32> to vector<8x1xf32>
    %cst_18 = arith.constant 7.812500e-03 : f32
    %54 = vector.broadcast %cst_18 : f32 to vector<8x1xf32>
    %55 = arith.mulf %53, %54 : vector<8x1xf32>
    %cst_19 = arith.constant 9.99999974E-6 : f32
    %56 = vector.broadcast %cst_19 : f32 to vector<8x1xf32>
    %57 = arith.addf %55, %56 : vector<8x1xf32>
    %58 = math.rsqrt %57 : vector<8x1xf32>
    %59 = vector.broadcast %58 : vector<8x1xf32> to vector<8x128xf32>
    %60 = arith.mulf %50, %59 : vector<8x128xf32>
    %61 = vector.broadcast %5 : vector<1x128xf32> to vector<8x128xf32>
    %62 = arith.mulf %60, %61 : vector<8x128xf32>
    %63 = vector.broadcast %6 : vector<1x128xf32> to vector<8x128xf32>
    %64 = arith.addf %62, %63 : vector<8x128xf32>
    %c0_20 = arith.constant 0 : index
    %c0_21 = arith.constant 0 : index
    %65 = vector.load %arg4[%c0_20, %c0_21] : memref<128x128xf32, #tpu.memory_space<vmem>>, vector<128x128xf32>
    %cst_22 = arith.constant dense<0.000000e+00> : vector<8x128xf32>
    %66 = tpu.matmul %64, %65, %cst_22 {dimension_numbers = #tpu.dot_dimension_numbers<[1], [0], [0], [1], [0, 0, 1, 1], [], []>} : vector<8x128xf32>, vector<128x128xf32>, vector<8x128xf32> -> vector<8x128xf32>
    %67 = vector.broadcast %7 : vector<1x128xf32> to vector<8x128xf32>
    %68 = arith.addf %66, %67 : vector<8x128xf32>
    %cst_23 = arith.constant 2.000000e-01 : f32
    %69 = vector.broadcast %cst_23 : f32 to vector<8x128xf32>
    %70 = arith.mulf %69, %68 : vector<8x128xf32>
    %71 = arith.maximumf %68, %70 : vector<8x128xf32>
    %cst_24 = arith.constant dense<0.000000e+00> : vector<8xf32>
    %72 = vector.multi_reduction <add>, %71, %cst_24 [1] : vector<8x128xf32> to vector<8xf32>
    %73 = vector.shape_cast %72 : vector<8xf32> to vector<8x1xf32>
    %cst_25 = arith.constant 7.812500e-03 : f32
    %74 = vector.broadcast %cst_25 : f32 to vector<8x1xf32>
    %75 = arith.mulf %73, %74 : vector<8x1xf32>
    %76 = vector.broadcast %75 : vector<8x1xf32> to vector<8x128xf32>
    %77 = arith.subf %71, %76 : vector<8x128xf32>
    %78 = arith.mulf %77, %77 : vector<8x128xf32>
    %cst_26 = arith.constant dense<0.000000e+00> : vector<8xf32>
    %79 = vector.multi_reduction <add>, %78, %cst_26 [1] : vector<8x128xf32> to vector<8xf32>
    %80 = vector.shape_cast %79 : vector<8xf32> to vector<8x1xf32>
    %cst_27 = arith.constant 7.812500e-03 : f32
    %81 = vector.broadcast %cst_27 : f32 to vector<8x1xf32>
    %82 = arith.mulf %80, %81 : vector<8x1xf32>
    %cst_28 = arith.constant 1.280000e+02 : f32
    %83 = vector.broadcast %cst_28 : f32 to vector<8x1xf32>
    %84 = arith.addf %82, %83 : vector<8x1xf32>
    %85 = math.rsqrt %84 : vector<8x1xf32>
    %86 = vector.broadcast %85 : vector<8x1xf32> to vector<8x128xf32>
    %87 = arith.mulf %77, %86 : vector<8x128xf32>
    %88 = vector.broadcast %8 : vector<1x128xf32> to vector<8x128xf32>
    %89 = arith.mulf %87, %88 : vector<8x128xf32>
    %90 = vector.broadcast %9 : vector<1x128xf32> to vector<8x128xf32>
    %91 = arith.addf %89, %90 : vector<8x128xf32>
    %c0_29 = arith.constant 0 : index
    %c0_30 = arith.constant 0 : index
    %92 = vector.load %arg5[%c0_29, %c0_30] : memref<128x128xf32, #tpu.memory_space<vmem>>, vector<128x128xf32>
    %cst_31 = arith.constant dense<0.000000e+00> : vector<8x128xf32>
    %93 = tpu.matmul %91, %92, %cst_31 {dimension_numbers = #tpu.dot_dimension_numbers<[1], [0], [0], [1], [0, 0, 1, 1], [], []>} : vector<8x128xf32>, vector<128x128xf32>, vector<8x128xf32> -> vector<8x128xf32>
    %c0_32 = arith.constant 0 : index
    %c0_33 = arith.constant 0 : index
    %94 = vector.load %arg7[%c0_32, %c0_33] : memref<1x128xf32, #tpu.memory_space<vmem>>, vector<1x128xf32>
    %95 = vector.broadcast %94 : vector<1x128xf32> to vector<8x128xf32>
    %96 = arith.addf %93, %95 : vector<8x128xf32>
    %97 = math.tanh %96 : vector<8x128xf32>
    %c0_34 = arith.constant 0 : index
    %c0_35 = arith.constant 0 : index
    %98 = vector.load %arg8[%c0_34, %c0_35] : memref<8x128xf32, #tpu.memory_space<vmem>>, vector<8x128xf32>
    tpu.vector_store %arg8[%c0_34, %c0_35], %97 {strides = array<i32>} : memref<8x128xf32, #tpu.memory_space<vmem>>, vector<8x128xf32>,
    return
  }
  func.func @transform_0(%arg0: i32) -> (i32, i32) {
    %c0_i32 = arith.constant 0 : i32
    %c0_i32_0 = arith.constant 0 : i32
    return %arg0, %c0_i32 : i32, i32
  }
  func.func @transform_1(%arg0: i32) -> (i32, i32) {
    %c0_i32 = arith.constant 0 : i32
    %c0_i32_0 = arith.constant 0 : i32
    %c0_i32_1 = arith.constant 0 : i32
    return %c0_i32, %c0_i32_0 : i32, i32
  }
  func.func @transform_2(%arg0: i32) -> (i32, i32) {
    %c0_i32 = arith.constant 0 : i32
    %c0_i32_0 = arith.constant 0 : i32
    %c0_i32_1 = arith.constant 0 : i32
    return %c0_i32, %c0_i32_0 : i32, i32
  }
  func.func @transform_3(%arg0: i32) -> (i32, i32) {
    %c0_i32 = arith.constant 0 : i32
    %c0_i32_0 = arith.constant 0 : i32
    %c0_i32_1 = arith.constant 0 : i32
    return %c0_i32, %c0_i32_0 : i32, i32
  }
  func.func @transform_4(%arg0: i32) -> (i32, i32) {
    %c0_i32 = arith.constant 0 : i32
    %c0_i32_0 = arith.constant 0 : i32
    %c0_i32_1 = arith.constant 0 : i32
    return %c0_i32, %c0_i32_0 : i32, i32
  }
  func.func @transform_5(%arg0: i32) -> (i32, i32) {
    %c0_i32 = arith.constant 0 : i32
    %c0_i32_0 = arith.constant 0 : i32
    %c0_i32_1 = arith.constant 0 : i32
    return %c0_i32, %c0_i32_0 : i32, i32
  }
  func.func @transform_6(%arg0: i32) -> (i32, i32) {
    %c0_i32 = arith.constant 0 : i32
    %c0_i32_0 = arith.constant 0 : i32
    %c0_i32_1 = arith.constant 0 : i32
    return %c0_i32, %c0_i32_0 : i32, i32
  }
  func.func @transform_7(%arg0: i32) -> (i32, i32) {
    %c0_i32 = arith.constant 0 : i32
    %c0_i32_0 = arith.constant 0 : i32
    return %arg0, %c0_i32 : i32, i32
  }
}

</mosaic_0001>

<llo_original>
// kernel: tpu_custom_call.1
$region0: #{tpu_custom_call.1}
  #allocation0 [shape = 'u32[]', space=smem, size = 0x4, offset = 0x4, fixed_abs, tag = 'smem constant byte address 0x4 - core index']
  #allocation1 [shape = 'u32[144,128]{1,0:T(1,128)}', space=vmem, size = 0x12000, scoped, tag = 'internal scratch']
  %s0 = inlined_call_operand.hbm [shape: f32[16,128], index: 0, kind: input, shape index: {}]
  %s1 = inlined_call_operand.hbm [shape: f32[128,128], index: 1, kind: input, shape index: {}]
  %s2 = inlined_call_operand.hbm [shape: f32[128,128], index: 2, kind: input, shape index: {}]
  %s3 = inlined_call_operand.hbm [shape: f32[128,128], index: 3, kind: input, shape index: {}]
  %s4 = inlined_call_operand.hbm [shape: f32[128,128], index: 4, kind: input, shape index: {}]
  %s5 = inlined_call_operand.vmem [shape: f32[16,128], index: 5, kind: input, shape index: {}]
  %s6 = inlined_call_operand.vmem [shape: f32[1,128], index: 6, kind: input, shape index: {}]
  %s7 = inlined_call_operand.hbm [shape: f32[16,128], index: 7, kind: output, shape index: {}]
  %s8 = sld [smem:[#allocation0]]
  $region81: #{tpu_custom_call.1} parent=0
    _
  %s10 = ssub.s32 1, %s8
  %s11 = scalar_select 0, %s10, %s8
  $region1: #{tpu_custom_call.1} parent=0
    #allocation2 [shape = 'u8[8192]{0}', space=vmem, size = 0x2000, scoped, tag = 'input window, operand 0']
    #allocation3 [shape = 's32[2]{0}', space=sflag, size = 0x8, scoped, tag = 'scoped memory for tpu_custom_call.1']
    #allocation4 [shape = 's32[2]{0}', space=sflag, size = 0x8, scoped, tag = 'scoped memory for tpu_custom_call.1']
    #allocation5 [shape = 'u8[65536]{0}', space=vmem, size = 0x10000, scoped, tag = 'input window, operand 1, single buffered']
    #allocation6 [shape = 's32[1]{0}', space=sflag, size = 0x4, scoped, tag = 'scoped memory for tpu_custom_call.1']
    #allocation7 [shape = 'u8[65536]{0}', space=vmem, size = 0x10000, scoped, tag = 'input window, operand 2, single buffered']
    #allocation8 [shape = 'u8[65536]{0}', space=vmem, size = 0x10000, scoped, tag = 'input window, operand 3, single buffered']
    #allocation9 [shape = 's32[1]{0}', space=sflag, size = 0x4, scoped, tag = 'scoped memory for tpu_custom_call.1']
    #allocation10 [shape = 'u8[65536]{0}', space=vmem, size = 0x10000, scoped, tag = 'input window, operand 4, single buffered']
    #allocation11 [shape = 'u8[8192]{0}', space=vmem, size = 0x2000, scoped, tag = 'output window, operand 0']
    %12 = vsyncpa [#allocation3], 0
    %s13 = scalar_lea.sflag [#allocation3], 1
    %14 = vsyncpa %s13, 0
    %15 = vsyncpa [#allocation6], 0
    %16 = vsyncpa [#allocation9], 0
    %17 = vsyncpa [#allocation4], 0
    %s18 = scalar_lea.sflag [#allocation4], 1
    %19 = vsyncpa %s18, 0
    loop: start=0, step=1, limit=4
    $region2: #{tpu_custom_call.1} parent=1 // loop_pre_header
      _
    $region3: #{tpu_custom_call.1} parent=1 // loop_header
      %s21 = sphi 0, %s25
      %p22 = scmp.ge.s32.totalorder %s21, 4
      %s31 = sphi 0, %s33
      %s34 = sphi 0, %s31
      %s35 = sphi 0, %s34
      %s51 = sphi 0, %s35
      %s55 = sphi 0, %s55
      %s57 = sphi 0, %s55
      %s58 = sphi 0, %s57
      %s72 = sphi 0, %s58
      %s76 = sphi 0, %s76
      %s78 = sphi 0, %s76
      %s79 = sphi 0, %s78
      %s93 = sphi 0, %s79
      %s97 = sphi 0, %s97
      %s99 = sphi 0, %s97
      %s100 = sphi 0, %s99
      %s114 = sphi 0, %s100
      %s118 = sphi 0, %s118
      %s120 = sphi 0, %s118
      %s121 = sphi 0, %s120
      %s135 = sphi 0, %s121
      %s139 = sphi 0, %s139
      %s141 = sphi 0, %s139
      %s142 = sphi 0, %s141
      %s156 = sphi 0, %s142
      %s160 = sphi 0, %s160
      %s162 = sphi 0, %s160
      %s163 = sphi 0, %s162
      %s177 = sphi 0, %s163
      %s183 = sphi 0, %s185
      %s186 = sphi 0, %s183
      %s187 = sphi 0, %s186
      %s203 = sphi 0, %s187
    $region4: #{tpu_custom_call.1} parent=1 // loop_header_branch
      %24 = sbr.rel (%p22) target = $region8
    $region5: #{tpu_custom_call.1} parent=1 // loop_body
      %s26 = ssub.s32 %s21, 1
      %s27 = ssub.s32 %s21, 2
      %s28 = sadd.s32 %s21, 1
      %s29 = ssub.s32 %s21, %s28
      %p30 = scmp.eq.s32.totalorder %s29, 0
      %s32 = sadd.s32 %s31, 1
      %s33 = scalar_select %p30, %s31, %s32
      %p36 = pneg %p30
      %p37 = scmp.eq.s32.totalorder %s21, 1
      %p38 = por %p36, %p37
      %p39 = scmp.ne.s32.totalorder %s31, %s34
      %p40 = scmp.eq.s32.totalorder %s21, 0
      %p41 = por %p39, %p40
      %p42 = scmp.ne.s32.totalorder %s31, %s34
      %p43 = scmp.eq.s32.totalorder %s26, 1
      %p44 = por %p42, %p43
      %p45 = scmp.ne.s32.totalorder %s34, %s35
      %p46 = scmp.eq.s32.totalorder %s26, 0
      %p47 = por %p45, %p46
      %p48 = scmp.ne.s32.totalorder %s34, %s35
      %p49 = scmp.eq.s32.totalorder %s27, 1
      %p50 = por %p48, %p49
      %p52 = scmp.ne.s32.totalorder %s35, %s51
      %p53 = scmp.eq.s32.totalorder %s27, 0
      %p54 = por %p52, %p53
      %s56 = sadd.s32 %s55, 1
      %p59 = scmp.eq.s32.totalorder %s21, 1
      %p60 = scmp.ne.s32.totalorder %s55, %s57
      %p61 = scmp.eq.s32.totalorder %s21, 0
      %p62 = por %p60, %p61
      %p63 = scmp.ne.s32.totalorder %s55, %s57
      %p64 = scmp.eq.s32.totalorder %s26, 1
      %p65 = por %p63, %p64
      %p66 = scmp.ne.s32.totalorder %s57, %s58
      %p67 = scmp.eq.s32.totalorder %s26, 0
      %p68 = por %p66, %p67
      %p69 = scmp.ne.s32.totalorder %s57, %s58
      %p70 = scmp.eq.s32.totalorder %s27, 1
      %p71 = por %p69, %p70
      %p73 = scmp.ne.s32.totalorder %s58, %s72
      %p74 = scmp.eq.s32.totalorder %s27, 0
      %p75 = por %p73, %p74
      %s77 = sadd.s32 %s76, 1
      %p80 = scmp.eq.s32.totalorder %s21, 1
      %p81 = scmp.ne.s32.totalorder %s76, %s78
      %p82 = scmp.eq.s32.totalorder %s21, 0
      %p83 = por %p81, %p82
      %p84 = scmp.ne.s32.totalorder %s76, %s78
      %p85 = scmp.eq.s32.totalorder %s26, 1
      %p86 = por %p84, %p85
      %p87 = scmp.ne.s32.totalorder %s78, %s79
      %p88 = scmp.eq.s32.totalorder %s26, 0
      %p89 = por %p87, %p88
      %p90 = scmp.ne.s32.totalorder %s78, %s79
      %p91 = scmp.eq.s32.totalorder %s27, 1
      %p92 = por %p90, %p91
      %p94 = scmp.ne.s32.totalorder %s79, %s93
      %p95 = scmp.eq.s32.totalorder %s27, 0
      %p96 = por %p94, %p95
      %s98 = sadd.s32 %s97, 1
      %p101 = scmp.eq.s32.totalorder %s21, 1
      %p102 = scmp.ne.s32.totalorder %s97, %s99
      %p103 = scmp.eq.s32.totalorder %s21, 0
      %p104 = por %p102, %p103
      %p105 = scmp.ne.s32.totalorder %s97, %s99
      %p106 = scmp.eq.s32.totalorder %s26, 1
      %p107 = por %p105, %p106
      %p108 = scmp.ne.s32.totalorder %s99, %s100
      %p109 = scmp.eq.s32.totalorder %s26, 0
      %p110 = por %p108, %p109
      %p111 = scmp.ne.s32.totalorder %s99, %s100
      %p112 = scmp.eq.s32.totalorder %s27, 1
      %p113 = por %p111, %p112
      %p115 = scmp.ne.s32.totalorder %s100, %s114
      %p116 = scmp.eq.s32.totalorder %s27, 0
      %p117 = por %p115, %p116
      %s119 = sadd.s32 %s118, 1
      %p122 = scmp.eq.s32.totalorder %s21, 1
      %p123 = scmp.ne.s32.totalorder %s118, %s120
      %p124 = scmp.eq.s32.totalorder %s21, 0
      %p125 = por %p123, %p124
      %p126 = scmp.ne.s32.totalorder %s118, %s120
      %p127 = scmp.eq.s32.totalorder %s26, 1
      %p128 = por %p126, %p127
      %p129 = scmp.ne.s32.totalorder %s120, %s121
      %p130 = scmp.eq.s32.totalorder %s26, 0
      %p131 = por %p129, %p130
      %p132 = scmp.ne.s32.totalorder %s120, %s121
      %p133 = scmp.eq.s32.totalorder %s27, 1
      %p134 = por %p132, %p133
      %p136 = scmp.ne.s32.totalorder %s121, %s135
      %p137 = scmp.eq.s32.totalorder %s27, 0
      %p138 = por %p136, %p137
      %s140 = sadd.s32 %s139, 1
      %p143 = scmp.eq.s32.totalorder %s21, 1
      %p144 = scmp.ne.s32.totalorder %s139, %s141
      %p145 = scmp.eq.s32.totalorder %s21, 0
      %p146 = por %p144, %p145
      %p147 = scmp.ne.s32.totalorder %s139, %s141
      %p148 = scmp.eq.s32.totalorder %s26, 1
      %p149 = por %p147, %p148
      %p150 = scmp.ne.s32.totalorder %s141, %s142
      %p151 = scmp.eq.s32.totalorder %s26, 0
      %p152 = por %p150, %p151
      %p153 = scmp.ne.s32.totalorder %s141, %s142
      %p154 = scmp.eq.s32.totalorder %s27, 1
      %p155 = por %p153, %p154
      %p157 = scmp.ne.s32.totalorder %s142, %s156
      %p158 = scmp.eq.s32.totalorder %s27, 0
      %p159 = por %p157, %p158
      %s161 = sadd.s32 %s160, 1
      %p164 = scmp.eq.s32.totalorder %s21, 1
      %p165 = scmp.ne.s32.totalorder %s160, %s162
      %p166 = scmp.eq.s32.totalorder %s21, 0
      %p167 = por %p165, %p166
      %p168 = scmp.ne.s32.totalorder %s160, %s162
      %p169 = scmp.eq.s32.totalorder %s26, 1
      %p170 = por %p168, %p169
      %p171 = scmp.ne.s32.totalorder %s162, %s163
      %p172 = scmp.eq.s32.totalorder %s26, 0
      %p173 = por %p171, %p172
      %p174 = scmp.ne.s32.totalorder %s162, %s163
      %p175 = scmp.eq.s32.totalorder %s27, 1
      %p176 = por %p174, %p175
      %p178 = scmp.ne.s32.totalorder %s163, %s177
      %p179 = scmp.eq.s32.totalorder %s27, 0
      %p180 = por %p178, %p179
      %s181 = ssub.s32 %s21, %s28
      %p182 = scmp.eq.s32.totalorder %s181, 0
      %s184 = sadd.s32 %s183, 1
      %s185 = scalar_select %p182, %s183, %s184
      %p188 = pneg %p182
      %p189 = scmp.eq.s32.totalorder %s21, 1
      %p190 = por %p188, %p189
      %p191 = scmp.ne.s32.totalorder %s183, %s186
      %p192 = scmp.eq.s32.totalorder %s21, 0
      %p193 = por %p191, %p192
      %p194 = scmp.ne.s32.totalorder %s183, %s186
      %p195 = scmp.eq.s32.totalorder %s26, 1
      %p196 = por %p194, %p195
      %p197 = scmp.ne.s32.totalorder %s186, %s187
      %p198 = scmp.eq.s32.totalorder %s26, 0
      %p199 = por %p197, %p198
      %p200 = scmp.ne.s32.totalorder %s186, %s187
      %p201 = scmp.eq.s32.totalorder %s27, 1
      %p202 = por %p200, %p201
      %p204 = scmp.ne.s32.totalorder %s187, %s203
      %p205 = scmp.eq.s32.totalorder %s27, 0
      %p206 = por %p204, %p205
      %p207 = scmp.le.s32.totalorder 1, %s21
      %p208 = scmp.lt.s32.totalorder %s21, 3
      %p209 = pnand %p207, %p208
      %p210 = pneg %p209
      // Predicated region
      $region9: #{tpu_custom_call.1} parent=5 // pred_check
        _
      $region10: #{tpu_custom_call.1} parent=5 // pred_check_branch
        %212 = sbr.rel (%p209) target = $region12
      $region11: #{tpu_custom_call.1} parent=5 // pred_region
        %s213 = ssub.s32 %s21, 1
        // Predicated region
        $region13: #{tpu_custom_call.1} parent=11 // pred_check
          %p214 = pneg %p68
        $region14: #{tpu_custom_call.1} parent=11 // pred_check_branch
          %216 = sbr.rel (%p214) target = $region16
        $region15: #{tpu_custom_call.1} parent=11 // pred_region
          %s218 = ssub.s32 2048, 2048
          %219 = vsyncadd [#allocation6], %s218
          %s220 = sshll.u32 [#allocation5], 4
          %s221 = int_to_ptr.vmem [resolvable:$true] %s220
          %226 = dma.hbm_to_vmem [thread:$0]  %s1, 2048, %s221, [#allocation6], 128, 128, 8
        $region16: #{tpu_custom_call.1} parent=11 // pred_fallthru
          _
        // Predicated region
        $region17: #{tpu_custom_call.1} parent=11 // pred_check
          %p227 = pneg %p89
        $region18: #{tpu_custom_call.1} parent=11 // pred_check_branch
          %229 = sbr.rel (%p227) target = $region20
        $region19: #{tpu_custom_call.1} parent=11 // pred_region
          %s231 = ssub.s32 2048, 2048
          %232 = vsyncadd [#allocation6], %s231
          %s233 = sshll.u32 [#allocation7], 4
          %s234 = int_to_ptr.vmem [resolvable:$true] %s233
          %239 = dma.hbm_to_vmem [thread:$0]  %s2, 2048, %s234, [#allocation6], 128, 128, 8
        $region20: #{tpu_custom_call.1} parent=11 // pred_fallthru
          _
        // Predicated region
        $region21: #{tpu_custom_call.1} parent=11 // pred_check
          %p240 = pneg %p110
        $region22: #{tpu_custom_call.1} parent=11 // pred_check_branch
          %242 = sbr.rel (%p240) target = $region24
        $region23: #{tpu_custom_call.1} parent=11 // pred_region
          %s244 = ssub.s32 2048, 2048
          %245 = vsyncadd [#allocation9], %s244
          %s246 = sshll.u32 [#allocation8], 4
          %s247 = int_to_ptr.vmem [resolvable:$true] %s246
          %252 = dma.hbm_to_vmem [thread:$0]  %s3, 2048, %s247, [#allocation9], 128, 128, 8
        $region24: #{tpu_custom_call.1} parent=11 // pred_fallthru
          _
        // Predicated region
        $region25: #{tpu_custom_call.1} parent=11 // pred_check
          %p253 = pneg %p131
        $region26: #{tpu_custom_call.1} parent=11 // pred_check_branch
          %255 = sbr.rel (%p253) target = $region28
        $region27: #{tpu_custom_call.1} parent=11 // pred_region
          %s257 = ssub.s32 2048, 2048
          %258 = vsyncadd [#allocation9], %s257
          %s259 = sshll.u32 [#allocation10], 4
          %s260 = int_to_ptr.vmem [resolvable:$true] %s259
          %265 = dma.hbm_to_vmem [thread:$0]  %s4, 2048, %s260, [#allocation9], 128, 128, 8
        $region28: #{tpu_custom_call.1} parent=11 // pred_fallthru
          _
        // Predicated region
        $region29: #{tpu_custom_call.1} parent=11 // pred_check
          %p266 = pneg %p152
        $region30: #{tpu_custom_call.1} parent=11 // pred_check_branch
          %268 = sbr.rel (%p266) target = $region32
        $region31: #{tpu_custom_call.1} parent=11 // pred_region
          _
        $region32: #{tpu_custom_call.1} parent=11 // pred_fallthru
          _
        // Predicated region
        $region33: #{tpu_custom_call.1} parent=11 // pred_check
          %p269 = pneg %p173
        $region34: #{tpu_custom_call.1} parent=11 // pred_check_branch
          %271 = sbr.rel (%p269) target = $region36
        $region35: #{tpu_custom_call.1} parent=11 // pred_region
          _
        $region36: #{tpu_custom_call.1} parent=11 // pred_fallthru
          _
      $region12: #{tpu_custom_call.1} parent=5 // pred_fallthru
        _
      %p272 = scmp.lt.s32.totalorder %s21, 2
      // Predicated region
      $region37: #{tpu_custom_call.1} parent=5 // pred_check
        %p273 = pneg %p272
      $region38: #{tpu_custom_call.1} parent=5 // pred_check_branch
        %275 = sbr.rel (%p273) target = $region40
      $region39: #{tpu_custom_call.1} parent=5 // pred_region
        // Predicated region
        $region41: #{tpu_custom_call.1} parent=39 // pred_check
          %p276 = pneg %p41
        $region42: #{tpu_custom_call.1} parent=39 // pred_check_branch
          %278 = sbr.rel (%p276) target = $region44
        $region43: #{tpu_custom_call.1} parent=39 // pred_region
          %s279 = sand.u32 %s31, 1
          %s280 = scalar_lea.sflag [#allocation3], %s279
          %s281 = sand.u32 %s31, 1
          %s282 = smul.addr %s281, 8
          %s283 = scalar_lea.vmem [#allocation2], %s282
          %s285 = ssub.s32 128, 128
          %286 = vsyncadd %s280, %s285
          %s287 = smul.addr %s21, 128
          %s288 = scalar_lea.hbm %s0, %s287
          %s290 = sshll.u32 %s283, 4
          %s291 = int_to_ptr.vmem [resolvable:$true] %s290
          %293 = dma.hbm_to_vmem [thread:$0]  %s288, 128, %s291, %s280
        $region44: #{tpu_custom_call.1} parent=39 // pred_fallthru
          _
      $region40: #{tpu_custom_call.1} parent=5 // pred_fallthru
        _
      %p294 = scmp.le.s32.totalorder 1, %s21
      %p295 = scmp.lt.s32.totalorder %s21, 3
      %p296 = pnand %p294, %p295
      %p297 = pneg %p296
      // Predicated region
      $region45: #{tpu_custom_call.1} parent=5 // pred_check
        _
      $region46: #{tpu_custom_call.1} parent=5 // pred_check_branch
        %299 = sbr.rel (%p296) target = $region48
      $region47: #{tpu_custom_call.1} parent=5 // pred_region
        %s300 = ssub.s32 %s21, 1
        %s301 = sand.u32 %s34, 1
        %s302 = scalar_lea.sflag [#allocation3], %s301
        %s303 = sand.u32 %s34, 1
        %s304 = smul.addr %s303, 8
        %s305 = scalar_lea.vmem [#allocation2], %s304
        // Predicated region
        $region49: #{tpu_custom_call.1} parent=47 // pred_check
          %p306 = pneg %p47
        $region50: #{tpu_custom_call.1} parent=47 // pred_check_branch
          %308 = sbr.rel (%p306) target = $region52
        $region51: #{tpu_custom_call.1} parent=47 // pred_region
          %309 = dma.done %s302, 128
        $region52: #{tpu_custom_call.1} parent=47 // pred_fallthru
          _
        // Predicated region
        $region53: #{tpu_custom_call.1} parent=47 // pred_check
          %p310 = pneg %p68
        $region54: #{tpu_custom_call.1} parent=47 // pred_check_branch
          %312 = sbr.rel (%p310) target = $region56
        $region55: #{tpu_custom_call.1} parent=47 // pred_region
          %313 = dma.done [#allocation6], 2048
        $region56: #{tpu_custom_call.1} parent=47 // pred_fallthru
          _
        // Predicated region
        $region57: #{tpu_custom_call.1} parent=47 // pred_check
          %p314 = pneg %p89
        $region58: #{tpu_custom_call.1} parent=47 // pred_check_branch
          %316 = sbr.rel (%p314) target = $region60
        $region59: #{tpu_custom_call.1} parent=47 // pred_region
          %317 = dma.done [#allocation6], 2048
        $region60: #{tpu_custom_call.1} parent=47 // pred_fallthru
          _
        // Predicated region
        $region61: #{tpu_custom_call.1} parent=47 // pred_check
          %p318 = pneg %p110
        $region62: #{tpu_custom_call.1} parent=47 // pred_check_branch
          %320 = sbr.rel (%p318) target = $region64
        $region63: #{tpu_custom_call.1} parent=47 // pred_region
          %321 = dma.done [#allocation9], 2048
        $region64: #{tpu_custom_call.1} parent=47 // pred_fallthru
          _
        // Predicated region
        $region65: #{tpu_custom_call.1} parent=47 // pred_check
          %p322 = pneg %p131
        $region66: #{tpu_custom_call.1} parent=47 // pred_check_branch
          %324 = sbr.rel (%p322) target = $region68
        $region67: #{tpu_custom_call.1} parent=47 // pred_region
          %325 = dma.done [#allocation9], 2048
        $region68: #{tpu_custom_call.1} parent=47 // pred_fallthru
          _
        %s326 = sand.u32 %s34, 1
        %s327 = scalar_lea.sflag [#allocation3], %s326
        %s328 = sand.u32 %s34, 1
        %s329 = smul.addr %s328, 8
        %s330 = scalar_lea.vmem [#allocation2], %s329
        %p331 = pneg %p47
        %p332 = pneg %p44
        %p333 = pneg %p68
        %p334 = pneg %p65
        %p335 = pneg %p89
        %p336 = pneg %p86
        %p337 = pneg %p110
        %p338 = pneg %p107
        %p339 = pneg %p131
        %p340 = pneg %p128
        %p341 = pneg %p152
        %p342 = pneg %p149
        %p343 = pneg %p173
        %p344 = pneg %p170
        %p345 = pneg %p199
        %p346 = pneg %p196
        %s347 = sand.u32 %s186, 1
        %s348 = scalar_lea.sflag [#allocation4], %s347
        %s349 = sand.u32 %s186, 1
        %s350 = smul.addr %s349, 8
        %s351 = scalar_lea.vmem [#allocation11], %s350
        %v352 = vld [vmem:[%s5] sm:$0xff]
        %v353 = vld [vmem:[%s5 + $0x8] sm:$0xff]
        %v354 = vld [vmem:[%s305] sm:$0xff]
        %v355 = vld [vmem:[#allocation5] sm:$0xff]
        %v356 = vld [vmem:[#allocation5 + $0x8] sm:$0xff]
        %v357 = vld [vmem:[#allocation5 + $0x10] sm:$0xff]
        %v358 = vld [vmem:[#allocation5 + $0x18] sm:$0xff]
        %v359 = vld [vmem:[#allocation5 + $0x20] sm:$0xff]
        %v360 = vld [vmem:[#allocation5 + $0x28] sm:$0xff]
        %v361 = vld [vmem:[#allocation5 + $0x30] sm:$0xff]
        %v362 = vld [vmem:[#allocation5 + $0x38] sm:$0xff]
        %v363 = vld [vmem:[#allocation5 + $0x40] sm:$0xff]
        %v364 = vld [vmem:[#allocation5 + $0x48] sm:$0xff]
        %v365 = vld [vmem:[#allocation5 + $0x50] sm:$0xff]
        %v366 = vld [vmem:[#allocation5 + $0x58] sm:$0xff]
        %v367 = vld [vmem:[#allocation5 + $0x60] sm:$0xff]
        %v368 = vld [vmem:[#allocation5 + $0x68] sm:$0xff]
        %v369 = vld [vmem:[#allocation5 + $0x70] sm:$0xff]
        %v370 = vld [vmem:[#allocation5 + $0x78] sm:$0xff]
        %v371 = vlaneseq
        %v372 = vshrl.u32 %v371, 7
        %v373 = vsub.s32 0, %v372
        %v374 = vrot.slane %v352, %v373
        %375 = vmatprep.subr.mxu0 0.0
        %376 = vmatpush1.msra.mxu0 %v355
        %377 = vmatprep.subr.mxu0 0.0
        %378 = vmatpush1.msra.mxu0 %v356
        %379 = vmatprep.subr.mxu0 0.0
        %380 = vmatpush1.msra.mxu0 %v357
        %381 = vmatprep.subr.mxu0 0.0
        %382 = vmatpush1.msra.mxu0 %v358
        %383 = vmatprep.subr.mxu0 0.0
        %384 = vmatpush1.msra.mxu0 %v359
        %385 = vmatprep.subr.mxu0 0.0
        %386 = vmatpush1.msra.mxu0 %v360
        %387 = vmatprep.subr.mxu0 0.0
        %388 = vmatpush1.msra.mxu0 %v361
        %389 = vmatprep.subr.mxu0 0.0
        %390 = vmatpush1.msra.mxu0 %v362
        %391 = vmatprep.subr.mxu0 0.0
        %392 = vmatpush1.msra.mxu0 %v363
        %393 = vmatprep.subr.mxu0 0.0
        %394 = vmatpush1.msra.mxu0 %v364
        %395 = vmatprep.subr.mxu0 0.0
        %396 = vmatpush1.msra.mxu0 %v365
        %397 = vmatprep.subr.mxu0 0.0
        %398 = vmatpush1.msra.mxu0 %v366
        %399 = vmatprep.subr.mxu0 0.0
        %400 = vmatpush1.msra.mxu0 %v367
        %401 = vmatprep.subr.mxu0 0.0
        %402 = vmatpush1.msra.mxu0 %v368
        %403 = vmatprep.subr.mxu0 0.0
        %404 = vmatpush1.msra.mxu0 %v369
        %405 = vmatprep.subr.mxu0 0.0
        %406 = vmatpush1.msra.mxu0 %v370
        %407 = vmatprep.subr.mxu0 0.0
        %408 = vmatpush1.msra.mxu0 0.0
        %409 = vmatprep.subr.mxu0 0.0
        %410 = vmatpush1.msra.mxu0 0.0
        %411 = vmatprep.subr.mxu0 0.0
        %412 = vmatpush1.msra.mxu0 0.0
        %413 = vmatprep.subr.mxu0 0.0
        %414 = vmatpush1.msra.mxu0 0.0
        %415 = vmatprep.subr.mxu0 0.0
        %416 = vmatpush1.msra.mxu0 0.0
        %417 = vmatprep.subr.mxu0 0.0
        %418 = vmatpush1.msra.mxu0 0.0
        %419 = vmatprep.subr.mxu0 0.0
        %420 = vmatpush1.msra.mxu0 0.0
        %421 = vmatprep.subr.mxu0 0.0
        %422 = vmatpush1.msra.mxu0 0.0
        %423 = vmatprep.subr.mxu0 0.0
        %424 = vmatpush1.msra.mxu0 0.0
        %425 = vmatprep.subr.mxu0 0.0
        %426 = vmatpush1.msra.mxu0 0.0
        %427 = vmatprep.subr.mxu0 0.0
        %428 = vmatpush1.msra.mxu0 0.0
        %429 = vmatprep.subr.mxu0 0.0
        %430 = vmatpush1.msra.mxu0 0.0
        %431 = vmatprep.subr.mxu0 0.0
        %432 = vmatpush1.msra.mxu0 0.0
        %433 = vmatprep.subr.mxu0 0.0
        %434 = vmatpush1.msra.mxu0 0.0
        %435 = vmatprep.subr.mxu0 0.0
        %436 = vmatpush1.msra.mxu0 0.0
        %437 = vmatprep.subr.mxu0 0.0
        %438 = vmatpush1.msra.mxu0 0.0
        %439 = vmatprep.mubr.f32.mxu0 0.0
        %440 = vmatmul.mubr.f32.gmra.mrb[0].mxu0 %v354
        %v441 = vpop.f32.mrb[0].mxu0
        %v442 = vadd.f32 %v374, %v441
        %v443 = vpop.f32.mrb[0].mxu0
        %444 = vdwg.mxu0
        %v445 = vmul.f32 %v442, 0.2
        %v446 = vmax.f32 %v442, %v445
        %447 = vadd.xlane.f32.xlu0 %v446
        %v448 = vpop.xlane.xlu0 %447
        %v449 = vmul.f32 %v448, 0.0078125
        %v450 = vsub.f32 %v446, %v449
        %v451 = vmul.f32 %v450, %v450
        %452 = vadd.xlane.f32.xlu0 %v451
        %v453 = vpop.xlane.xlu0 %452
        %v454 = vmul.f32 %v453, 0.0078125
        %v455 = vadd.f32 %v454, 1e-05
        %v456 = vrsqrt.pop %v455
        %v457 = vmul.f32 %v450, %v456
        %v458 = vlaneseq
        %v459 = vshrl.u32 %v458, 7
        %v460 = vsub.s32 1, %v459
        %v461 = vrot.slane %v352, %v460
        %v462 = vmul.f32 %v457, %v461
        %v463 = vlaneseq
        %v464 = vshrl.u32 %v463, 7
        %v465 = vsub.s32 2, %v464
        %v466 = vrot.slane %v352, %v465
        %v467 = vadd.f32 %v462, %v466
        %v468 = vld [vmem:[#allocation7] sm:$0xff]
        %v469 = vld [vmem:[#allocation7 + $0x8] sm:$0xff]
        %v470 = vld [vmem:[#allocation7 + $0x10] sm:$0xff]
        %v471 = vld [vmem:[#allocation7 + $0x18] sm:$0xff]
        %v472 = vld [vmem:[#allocation7 + $0x20] sm:$0xff]
        %v473 = vld [vmem:[#allocation7 + $0x28] sm:$0xff]
        %v474 = vld [vmem:[#allocation7 + $0x30] sm:$0xff]
        %v475 = vld [vmem:[#allocation7 + $0x38] sm:$0xff]
        %v476 = vld [vmem:[#allocation7 + $0x40] sm:$0xff]
        %v477 = vld [vmem:[#allocation7 + $0x48] sm:$0xff]
        %v478 = vld [vmem:[#allocation7 + $0x50] sm:$0xff]
        %v479 = vld [vmem:[#allocation7 + $0x58] sm:$0xff]
        %v480 = vld [vmem:[#allocation7 + $0x60] sm:$0xff]
        %v481 = vld [vmem:[#allocation7 + $0x68] sm:$0xff]
        %v482 = vld [vmem:[#allocation7 + $0x70] sm:$0xff]
        %v483 = vld [vmem:[#allocation7 + $0x78] sm:$0xff]
        %v484 = vlaneseq
        %v485 = vshrl.u32 %v484, 7
        %v486 = vsub.s32 3, %v485
        %v487 = vrot.slane %v352, %v486
        %488 = vmatprep.subr.mxu0 0.0
        %489 = vmatpush1.msra.mxu0 %v468
        %490 = vmatprep.subr.mxu0 0.0
        %491 = vmatpush1.msra.mxu0 %v469
        %492 = vmatprep.subr.mxu0 0.0
        %493 = vmatpush1.msra.mxu0 %v470
        %494 = vmatprep.subr.mxu0 0.0
        %495 = vmatpush1.msra.mxu0 %v471
        %496 = vmatprep.subr.mxu0 0.0
        %497 = vmatpush1.msra.mxu0 %v472
        %498 = vmatprep.subr.mxu0 0.0
        %499 = vmatpush1.msra.mxu0 %v473
        %500 = vmatprep.subr.mxu0 0.0
        %501 = vmatpush1.msra.mxu0 %v474
        %502 = vmatprep.subr.mxu0 0.0
        %503 = vmatpush1.msra.mxu0 %v475
        %504 = vmatprep.subr.mxu0 0.0
        %505 = vmatpush1.msra.mxu0 %v476
        %506 = vmatprep.subr.mxu0 0.0
        %507 = vmatpush1.msra.mxu0 %v477
        %508 = vmatprep.subr.mxu0 0.0
        %509 = vmatpush1.msra.mxu0 %v478
        %510 = vmatprep.subr.mxu0 0.0
        %511 = vmatpush1.msra.mxu0 %v479
        %512 = vmatprep.subr.mxu0 0.0
        %513 = vmatpush1.msra.mxu0 %v480
        %514 = vmatprep.subr.mxu0 0.0
        %515 = vmatpush1.msra.mxu0 %v481
        %516 = vmatprep.subr.mxu0 0.0
        %517 = vmatpush1.msra.mxu0 %v482
        %518 = vmatprep.subr.mxu0 0.0
        %519 = vmatpush1.msra.mxu0 %v483
        %520 = vmatprep.subr.mxu0 0.0
        %521 = vmatpush1.msra.mxu0 0.0
        %522 = vmatprep.subr.mxu0 0.0
        %523 = vmatpush1.msra.mxu0 0.0
        %524 = vmatprep.subr.mxu0 0.0
        %525 = vmatpush1.msra.mxu0 0.0
        %526 = vmatprep.subr.mxu0 0.0
        %527 = vmatpush1.msra.mxu0 0.0
        %528 = vmatprep.subr.mxu0 0.0
        %529 = vmatpush1.msra.mxu0 0.0
        %530 = vmatprep.subr.mxu0 0.0
        %531 = vmatpush1.msra.mxu0 0.0
        %532 = vmatprep.subr.mxu0 0.0
        %533 = vmatpush1.msra.mxu0 0.0
        %534 = vmatprep.subr.mxu0 0.0
        %535 = vmatpush1.msra.mxu0 0.0
        %536 = vmatprep.subr.mxu0 0.0
        %537 = vmatpush1.msra.mxu0 0.0
        %538 = vmatprep.subr.mxu0 0.0
        %539 = vmatpush1.msra.mxu0 0.0
        %540 = vmatprep.subr.mxu0 0.0
        %541 = vmatpush1.msra.mxu0 0.0
        %542 = vmatprep.subr.mxu0 0.0
        %543 = vmatpush1.msra.mxu0 0.0
        %544 = vmatprep.subr.mxu0 0.0
        %545 = vmatpush1.msra.mxu0 0.0
        %546 = vmatprep.subr.mxu0 0.0
        %547 = vmatpush1.msra.mxu0 0.0
        %548 = vmatprep.subr.mxu0 0.0
        %549 = vmatpush1.msra.mxu0 0.0
        %550 = vmatprep.subr.mxu0 0.0
        %551 = vmatpush1.msra.mxu0 0.0
        %552 = vmatprep.mubr.f32.mxu0 0.0
        %553 = vmatmul.mubr.f32.gmra.mrb[0].mxu0 %v467
        %v554 = vpop.f32.mrb[0].mxu0
        %v555 = vadd.f32 %v487, %v554
        %v556 = vpop.f32.mrb[0].mxu0
        %557 = vdwg.mxu0
        %v558 = vmul.f32 %v555, 0.2
        %v559 = vmax.f32 %v555, %v558
        %560 = vadd.xlane.f32.xlu0 %v559
        %v561 = vpop.xlane.xlu0 %560
        %v562 = vmul.f32 %v561, 0.0078125
        %v563 = vsub.f32 %v559, %v562
        %v564 = vmul.f32 %v563, %v563
        %565 = vadd.xlane.f32.xlu0 %v564
        %v566 = vpop.xlane.xlu0 %565
        %v567 = vmul.f32 %v566, 0.0078125
        %v568 = vadd.f32 %v567, 1e-05
        %v569 = vrsqrt.pop %v568
        %v570 = vmul.f32 %v563, %v569
        %v571 = vlaneseq
        %v572 = vshrl.u32 %v571, 7
        %v573 = vsub.s32 4, %v572
        %v574 = vrot.slane %v352, %v573
        %v575 = vmul.f32 %v570, %v574
        %v576 = vlaneseq
        %v577 = vshrl.u32 %v576, 7
        %v578 = vsub.s32 5, %v577
        %v579 = vrot.slane %v352, %v578
        %v580 = vadd.f32 %v575, %v579
        %v581 = vld [vmem:[#allocation8] sm:$0xff]
        %v582 = vld [vmem:[#allocation8 + $0x8] sm:$0xff]
        %v583 = vld [vmem:[#allocation8 + $0x10] sm:$0xff]
        %v584 = vld [vmem:[#allocation8 + $0x18] sm:$0xff]
        %v585 = vld [vmem:[#allocation8 + $0x20] sm:$0xff]
        %v586 = vld [vmem:[#allocation8 + $0x28] sm:$0xff]
        %v587 = vld [vmem:[#allocation8 + $0x30] sm:$0xff]
        %v588 = vld [vmem:[#allocation8 + $0x38] sm:$0xff]
        %v589 = vld [vmem:[#allocation8 + $0x40] sm:$0xff]
        %v590 = vld [vmem:[#allocation8 + $0x48] sm:$0xff]
        %v591 = vld [vmem:[#allocation8 + $0x50] sm:$0xff]
        %v592 = vld [vmem:[#allocation8 + $0x58] sm:$0xff]
        %v593 = vld [vmem:[#allocation8 + $0x60] sm:$0xff]
        %v594 = vld [vmem:[#allocation8 + $0x68] sm:$0xff]
        %v595 = vld [vmem:[#allocation8 + $0x70] sm:$0xff]
        %v596 = vld [vmem:[#allocation8 + $0x78] sm:$0xff]
        %v597 = vlaneseq
        %v598 = vshrl.u32 %v597, 7
        %v599 = vsub.s32 6, %v598
        %v600 = vrot.slane %v352, %v599
        %601 = vmatprep.subr.mxu0 0.0
        %602 = vmatpush1.msra.mxu0 %v581
        %603 = vmatprep.subr.mxu0 0.0
        %604 = vmatpush1.msra.mxu0 %v582
        %605 = vmatprep.subr.mxu0 0.0
        %606 = vmatpush1.msra.mxu0 %v583
        %607 = vmatprep.subr.mxu0 0.0
        %608 = vmatpush1.msra.mxu0 %v584
        %609 = vmatprep.subr.mxu0 0.0
        %610 = vmatpush1.msra.mxu0 %v585
        %611 = vmatprep.subr.mxu0 0.0
        %612 = vmatpush1.msra.mxu0 %v586
        %613 = vmatprep.subr.mxu0 0.0
        %614 = vmatpush1.msra.mxu0 %v587
        %615 = vmatprep.subr.mxu0 0.0
        %616 = vmatpush1.msra.mxu0 %v588
        %617 = vmatprep.subr.mxu0 0.0
        %618 = vmatpush1.msra.mxu0 %v589
        %619 = vmatprep.subr.mxu0 0.0
        %620 = vmatpush1.msra.mxu0 %v590
        %621 = vmatprep.subr.mxu0 0.0
        %622 = vmatpush1.msra.mxu0 %v591
        %623 = vmatprep.subr.mxu0 0.0
        %624 = vmatpush1.msra.mxu0 %v592
        %625 = vmatprep.subr.mxu0 0.0
        %626 = vmatpush1.msra.mxu0 %v593
        %627 = vmatprep.subr.mxu0 0.0
        %628 = vmatpush1.msra.mxu0 %v594
        %629 = vmatprep.subr.mxu0 0.0
        %630 = vmatpush1.msra.mxu0 %v595
        %631 = vmatprep.subr.mxu0 0.0
        %632 = vmatpush1.msra.mxu0 %v596
        %633 = vmatprep.subr.mxu0 0.0
        %634 = vmatpush1.msra.mxu0 0.0
        %635 = vmatprep.subr.mxu0 0.0
        %636 = vmatpush1.msra.mxu0 0.0
        %637 = vmatprep.subr.mxu0 0.0
        %638 = vmatpush1.msra.mxu0 0.0
        %639 = vmatprep.subr.mxu0 0.0
        %640 = vmatpush1.msra.mxu0 0.0
        %641 = vmatprep.subr.mxu0 0.0
        %642 = vmatpush1.msra.mxu0 0.0
        %643 = vmatprep.subr.mxu0 0.0
        %644 = vmatpush1.msra.mxu0 0.0
        %645 = vmatprep.subr.mxu0 0.0
        %646 = vmatpush1.msra.mxu0 0.0
        %647 = vmatprep.subr.mxu0 0.0
        %648 = vmatpush1.msra.mxu0 0.0
        %649 = vmatprep.subr.mxu0 0.0
        %650 = vmatpush1.msra.mxu0 0.0
        %651 = vmatprep.subr.mxu0 0.0
        %652 = vmatpush1.msra.mxu0 0.0
        %653 = vmatprep.subr.mxu0 0.0
        %654 = vmatpush1.msra.mxu0 0.0
        %655 = vmatprep.subr.mxu0 0.0
        %656 = vmatpush1.msra.mxu0 0.0
        %657 = vmatprep.subr.mxu0 0.0
        %658 = vmatpush1.msra.mxu0 0.0
        %659 = vmatprep.subr.mxu0 0.0
        %660 = vmatpush1.msra.mxu0 0.0
        %661 = vmatprep.subr.mxu0 0.0
        %662 = vmatpush1.msra.mxu0 0.0
        %663 = vmatprep.subr.mxu0 0.0
        %664 = vmatpush1.msra.mxu0 0.0
        %665 = vmatprep.mubr.f32.mxu0 0.0
        %666 = vmatmul.mubr.f32.gmra.mrb[0].mxu0 %v580
        %v667 = vpop.f32.mrb[0].mxu0
        %v668 = vadd.f32 %v600, %v667
        %v669 = vpop.f32.mrb[0].mxu0
        %670 = vdwg.mxu0
        %v671 = vmul.f32 %v668, 0.2
        %v672 = vmax.f32 %v668, %v671
        %673 = vadd.xlane.f32.xlu0 %v672
        %v674 = vpop.xlane.xlu0 %673
        %v675 = vmul.f32 %v674, 0.0078125
        %v676 = vsub.f32 %v672, %v675
        %v677 = vmul.f32 %v676, %v676
        %678 = vadd.xlane.f32.xlu0 %v677
        %v679 = vpop.xlane.xlu0 %678
        %v680 = vmul.f32 %v679, 0.0078125
        %v681 = vadd.f32 %v680, 128.0
        %v682 = vrsqrt.pop %v681
        %v683 = vmul.f32 %v676, %v682
        %v684 = vlaneseq
        %v685 = vshrl.u32 %v684, 7
        %v686 = vsub.s32 7, %v685
        %v687 = vrot.slane %v352, %v686
        %v688 = vmul.f32 %v683, %v687
        %v689 = vlaneseq
        %v690 = vshrl.u32 %v689, 7
        %v691 = vsub.s32 0, %v690
        %v692 = vrot.slane %v353, %v691
        %v693 = vadd.f32 %v688, %v692
        %v694 = vld [vmem:[#allocation10] sm:$0xff]
        %v695 = vld [vmem:[#allocation10 + $0x8] sm:$0xff]
        %v696 = vld [vmem:[#allocation10 + $0x10] sm:$0xff]
        %v697 = vld [vmem:[#allocation10 + $0x18] sm:$0xff]
        %v698 = vld [vmem:[#allocation10 + $0x20] sm:$0xff]
        %v699 = vld [vmem:[#allocation10 + $0x28] sm:$0xff]
        %v700 = vld [vmem:[#allocation10 + $0x30] sm:$0xff]
        %v701 = vld [vmem:[#allocation10 + $0x38] sm:$0xff]
        %v702 = vld [vmem:[#allocation10 + $0x40] sm:$0xff]
        %v703 = vld [vmem:[#allocation10 + $0x48] sm:$0xff]
        %v704 = vld [vmem:[#allocation10 + $0x50] sm:$0xff]
        %v705 = vld [vmem:[#allocation10 + $0x58] sm:$0xff]
        %v706 = vld [vmem:[#allocation10 + $0x60] sm:$0xff]
        %v707 = vld [vmem:[#allocation10 + $0x68] sm:$0xff]
        %v708 = vld [vmem:[#allocation10 + $0x70] sm:$0xff]
        %v709 = vld [vmem:[#allocation10 + $0x78] sm:$0xff]
        %v710 = vld [vmem:[%s6] sm:$0x1]
        %v712 = vlaneseq
        %v713 = vshrl.u32 %v712, 7
        %v714 = vsub.s32 0, %v713
        %v715 = vrot.slane %v710, %v714
        %717 = vmatprep.subr.mxu0 0.0
        %718 = vmatpush1.msra.mxu0 %v694
        %719 = vmatprep.subr.mxu0 0.0
        %720 = vmatpush1.msra.mxu0 %v695
        %721 = vmatprep.subr.mxu0 0.0
        %722 = vmatpush1.msra.mxu0 %v696
        %723 = vmatprep.subr.mxu0 0.0
        %724 = vmatpush1.msra.mxu0 %v697
        %725 = vmatprep.subr.mxu0 0.0
        %726 = vmatpush1.msra.mxu0 %v698
        %727 = vmatprep.subr.mxu0 0.0
        %728 = vmatpush1.msra.mxu0 %v699
        %729 = vmatprep.subr.mxu0 0.0
        %730 = vmatpush1.msra.mxu0 %v700
        %731 = vmatprep.subr.mxu0 0.0
        %732 = vmatpush1.msra.mxu0 %v701
        %733 = vmatprep.subr.mxu0 0.0
        %734 = vmatpush1.msra.mxu0 %v702
        %735 = vmatprep.subr.mxu0 0.0
        %736 = vmatpush1.msra.mxu0 %v703
        %737 = vmatprep.subr.mxu0 0.0
        %738 = vmatpush1.msra.mxu0 %v704
        %739 = vmatprep.subr.mxu0 0.0
        %740 = vmatpush1.msra.mxu0 %v705
        %741 = vmatprep.subr.mxu0 0.0
        %742 = vmatpush1.msra.mxu0 %v706
        %743 = vmatprep.subr.mxu0 0.0
        %744 = vmatpush1.msra.mxu0 %v707
        %745 = vmatprep.subr.mxu0 0.0
        %746 = vmatpush1.msra.mxu0 %v708
        %747 = vmatprep.subr.mxu0 0.0
        %748 = vmatpush1.msra.mxu0 %v709
        %749 = vmatprep.subr.mxu0 0.0
        %750 = vmatpush1.msra.mxu0 0.0
        %751 = vmatprep.subr.mxu0 0.0
        %752 = vmatpush1.msra.mxu0 0.0
        %753 = vmatprep.subr.mxu0 0.0
        %754 = vmatpush1.msra.mxu0 0.0
        %755 = vmatprep.subr.mxu0 0.0
        %756 = vmatpush1.msra.mxu0 0.0
        %757 = vmatprep.subr.mxu0 0.0
        %758 = vmatpush1.msra.mxu0 0.0
        %759 = vmatprep.subr.mxu0 0.0
        %760 = vmatpush1.msra.mxu0 0.0
        %761 = vmatprep.subr.mxu0 0.0
        %762 = vmatpush1.msra.mxu0 0.0
        %763 = vmatprep.subr.mxu0 0.0
        %764 = vmatpush1.msra.mxu0 0.0
        %765 = vmatprep.subr.mxu0 0.0
        %766 = vmatpush1.msra.mxu0 0.0
        %767 = vmatprep.subr.mxu0 0.0
        %768 = vmatpush1.msra.mxu0 0.0
        %769 = vmatprep.subr.mxu0 0.0
        %770 = vmatpush1.msra.mxu0 0.0
        %771 = vmatprep.subr.mxu0 0.0
        %772 = vmatpush1.msra.mxu0 0.0
        %773 = vmatprep.subr.mxu0 0.0
        %774 = vmatpush1.msra.mxu0 0.0
        %775 = vmatprep.subr.mxu0 0.0
        %776 = vmatpush1.msra.mxu0 0.0
        %777 = vmatprep.subr.mxu0 0.0
        %778 = vmatpush1.msra.mxu0 0.0
        %779 = vmatprep.subr.mxu0 0.0
        %780 = vmatpush1.msra.mxu0 0.0
        %781 = vmatprep.mubr.f32.mxu0 0.0
        %782 = vmatmul.mubr.f32.gmra.mrb[0].mxu0 %v693
        %v783 = vpop.f32.mrb[0].mxu0
        %v784 = vadd.f32 %v715, %v783
        %v785 = vpop.f32.mrb[0].mxu0
        %786 = vdwg.mxu0
        %v787 = vtanh.pop %v784
        %788 = vst [vmem:[%s351] sm:$0xff] %v787
        %s789 = sand.u32 %s186, 1
        %s790 = scalar_lea.sflag [#allocation4], %s789
        %s791 = sand.u32 %s186, 1
        %s792 = smul.addr %s791, 8
        %s793 = scalar_lea.vmem [#allocation11], %s792
        // Predicated region
        $region69: #{tpu_custom_call.1} parent=47 // pred_check
          %p794 = pneg %p196
        $region70: #{tpu_custom_call.1} parent=47 // pred_check_branch
          %796 = sbr.rel (%p794) target = $region72
        $region71: #{tpu_custom_call.1} parent=47 // pred_region
          %s798 = ssub.s32 128, 128
          %799 = vsyncadd %s790, %s798
          %s800 = smul.addr %s26, 128
          %s801 = scalar_lea.hbm %s7, %s800
          %s803 = sshll.u32 %s793, 4
          %s804 = int_to_ptr.vmem [resolvable:$true] %s803
          %806 = dma.vmem_to_hbm [thread:$0]  %s804, 128, %s801, %s790
        $region72: #{tpu_custom_call.1} parent=47 // pred_fallthru
          _
      $region48: #{tpu_custom_call.1} parent=5 // pred_fallthru
        _
      %p807 = scmp.le.s32.totalorder 2, %s21
      // Predicated region
      $region73: #{tpu_custom_call.1} parent=5 // pred_check
        %p808 = pneg %p807
      $region74: #{tpu_custom_call.1} parent=5 // pred_check_branch
        %810 = sbr.rel (%p808) target = $region76
      $region75: #{tpu_custom_call.1} parent=5 // pred_region
        %s811 = ssub.s32 %s21, 2
        // Predicated region
        $region77: #{tpu_custom_call.1} parent=75 // pred_check
          %p812 = pneg %p202
        $region78: #{tpu_custom_call.1} parent=75 // pred_check_branch
          %814 = sbr.rel (%p812) target = $region80
        $region79: #{tpu_custom_call.1} parent=75 // pred_region
          %s815 = sand.u32 %s187, 1
          %s816 = scalar_lea.sflag [#allocation4], %s815
          %s817 = sand.u32 %s187, 1
          %s818 = smul.addr %s817, 8
          %s819 = scalar_lea.vmem [#allocation11], %s818
          %820 = dma.done %s816, 128
        $region80: #{tpu_custom_call.1} parent=75 // pred_fallthru
          _
      $region76: #{tpu_custom_call.1} parent=5 // pred_fallthru
        _
    $region6: #{tpu_custom_call.1} parent=1 // loop_footer
      %s25 = sadd.s32 1, %s21
    $region7: #{tpu_custom_call.1} parent=1 // loop_footer_branch
      %20 = sbr.rel target = $region3
    $region8: #{tpu_custom_call.1} parent=1 // loop_exit
      _
    %821 = vsyncpa [#allocation3], 1
    %s822 = scalar_lea.sflag [#allocation3], 1
    %823 = vsyncpa %s822, 1
    %824 = vsyncpa [#allocation6], 1
    %825 = vsyncpa [#allocation9], 1
    %826 = vsyncpa [#allocation4], 1
    %s827 = scalar_lea.sflag [#allocation4], 1
    %828 = vsyncpa %s827, 1

// kernel: tpu_custom_call.1
$region0: #{tpu_custom_call.1}
  #allocation0 [shape = 'u32[]', space=smem, size = 0x4, offset = 0x4, fixed_abs, tag = 'smem constant byte address 0x4 - core index']
  #allocation1 [shape = 'u32[144,128]{1,0:T(1,128)}', space=vmem, size = 0x12000, scoped, tag = 'internal scratch']
  %s0 = inlined_call_operand.hbm [shape: f32[16,128], index: 0, kind: input, shape index: {}]
  %s1 = inlined_call_operand.hbm [shape: f32[128,128], index: 1, kind: input, shape index: {}]
  %s2 = inlined_call_operand.hbm [shape: f32[128,128], index: 2, kind: input, shape index: {}]
  %s3 = inlined_call_operand.hbm [shape: f32[128,128], index: 3, kind: input, shape index: {}]
  %s4 = inlined_call_operand.hbm [shape: f32[128,128], index: 4, kind: input, shape index: {}]
  %s5 = inlined_call_operand.vmem [shape: f32[16,128], index: 5, kind: input, shape index: {}]
  %s6 = inlined_call_operand.vmem [shape: f32[1,128], index: 6, kind: input, shape index: {}]
  %s7 = inlined_call_operand.hbm [shape: f32[16,128], index: 7, kind: output, shape index: {}]
  %s8 = sld [smem:[#allocation0]]
  $region81: #{tpu_custom_call.1} parent=0
    _
  %s10 = ssub.s32 1, %s8
  %s11 = scalar_select 0, %s10, %s8
  $region1: #{tpu_custom_call.1} parent=0
    #allocation2 [shape = 'u8[8192]{0}', space=vmem, size = 0x2000, scoped, tag = 'input window, operand 0']
    #allocation3 [shape = 's32[2]{0}', space=sflag, size = 0x8, scoped, tag = 'scoped memory for tpu_custom_call.1']
    #allocation4 [shape = 's32[2]{0}', space=sflag, size = 0x8, scoped, tag = 'scoped memory for tpu_custom_call.1']
    #allocation5 [shape = 'u8[65536]{0}', space=vmem, size = 0x10000, scoped, tag = 'input window, operand 1, single buffered']
    #allocation6 [shape = 's32[1]{0}', space=sflag, size = 0x4, scoped, tag = 'scoped memory for tpu_custom_call.1']
    #allocation7 [shape = 'u8[65536]{0}', space=vmem, size = 0x10000, scoped, tag = 'input window, operand 2, single buffered']
    #allocation8 [shape = 'u8[65536]{0}', space=vmem, size = 0x10000, scoped, tag = 'input window, operand 3, single buffered']
    #allocation9 [shape = 's32[1]{0}', space=sflag, size = 0x4, scoped, tag = 'scoped memory for tpu_custom_call.1']
    #allocation10 [shape = 'u8[65536]{0}', space=vmem, size = 0x10000, scoped, tag = 'input window, operand 4, single buffered']
    #allocation11 [shape = 'u8[8192]{0}', space=vmem, size = 0x2000, scoped, tag = 'output window, operand 0']
    %12 = vsyncpa [#allocation3], 0
    %s13 = scalar_lea.sflag [#allocation3], 1
    %14 = vsyncpa %s13, 0
    %15 = vsyncpa [#allocation6], 0
    %16 = vsyncpa [#allocation9], 0
    %17 = vsyncpa [#allocation4], 0
    %s18 = scalar_lea.sflag [#allocation4], 1
    %19 = vsyncpa %s18, 0
    loop: start=0, step=1, limit=4
    $region2: #{tpu_custom_call.1} parent=1 // loop_pre_header
      _
    $region3: #{tpu_custom_call.1} parent=1 // loop_header
      %s21 = sphi 0, %s25
      %p22 = scmp.ge.s32.totalorder %s21, 4
      %s31 = sphi 0, %s33
      %s34 = sphi 0, %s31
      %s35 = sphi 0, %s34
      %s51 = sphi 0, %s35
      %s55 = sphi 0, %s55
      %s57 = sphi 0, %s55
      %s58 = sphi 0, %s57
      %s72 = sphi 0, %s58
      %s76 = sphi 0, %s76
      %s78 = sphi 0, %s76
      %s79 = sphi 0, %s78
      %s93 = sphi 0, %s79
      %s97 = sphi 0, %s97
      %s99 = sphi 0, %s97
      %s100 = sphi 0, %s99
      %s114 = sphi 0, %s100
      %s118 = sphi 0, %s118
      %s120 = sphi 0, %s118
      %s121 = sphi 0, %s120
      %s135 = sphi 0, %s121
      %s139 = sphi 0, %s139
      %s141 = sphi 0, %s139
      %s142 = sphi 0, %s141
      %s156 = sphi 0, %s142
      %s160 = sphi 0, %s160
      %s162 = sphi 0, %s160
      %s163 = sphi 0, %s162
      %s177 = sphi 0, %s163
      %s183 = sphi 0, %s185
      %s186 = sphi 0, %s183
      %s187 = sphi 0, %s186
      %s203 = sphi 0, %s187
    $region4: #{tpu_custom_call.1} parent=1 // loop_header_branch
      %24 = sbr.rel (%p22) target = $region8
    $region5: #{tpu_custom_call.1} parent=1 // loop_body
      %s26 = ssub.s32 %s21, 1
      %s27 = ssub.s32 %s21, 2
      %s28 = sadd.s32 %s21, 1
      %s29 = ssub.s32 %s21, %s28
      %p30 = scmp.eq.s32.totalorder %s29, 0
      %s32 = sadd.s32 %s31, 1
      %s33 = scalar_select %p30, %s31, %s32
      %p36 = pneg %p30
      %p37 = scmp.eq.s32.totalorder %s21, 1
      %p38 = por %p36, %p37
      %p39 = scmp.ne.s32.totalorder %s31, %s34
      %p40 = scmp.eq.s32.totalorder %s21, 0
      %p41 = por %p39, %p40
      %p42 = scmp.ne.s32.totalorder %s31, %s34
      %p43 = scmp.eq.s32.totalorder %s26, 1
      %p44 = por %p42, %p43
      %p45 = scmp.ne.s32.totalorder %s34, %s35
      %p46 = scmp.eq.s32.totalorder %s26, 0
      %p47 = por %p45, %p46
      %p48 = scmp.ne.s32.totalorder %s34, %s35
      %p49 = scmp.eq.s32.totalorder %s27, 1
      %p50 = por %p48, %p49
      %p52 = scmp.ne.s32.totalorder %s35, %s51
      %p53 = scmp.eq.s32.totalorder %s27, 0
      %p54 = por %p52, %p53
      %s56 = sadd.s32 %s55, 1
      %p59 = scmp.eq.s32.totalorder %s21, 1
      %p60 = scmp.ne.s32.totalorder %s55, %s57
      %p61 = scmp.eq.s32.totalorder %s21, 0
      %p62 = por %p60, %p61
      %p63 = scmp.ne.s32.totalorder %s55, %s57
      %p64 = scmp.eq.s32.totalorder %s26, 1
      %p65 = por %p63, %p64
      %p66 = scmp.ne.s32.totalorder %s57, %s58
      %p67 = scmp.eq.s32.totalorder %s26, 0
      %p68 = por %p66, %p67
      %p69 = scmp.ne.s32.totalorder %s57, %s58
      %p70 = scmp.eq.s32.totalorder %s27, 1
      %p71 = por %p69, %p70
      %p73 = scmp.ne.s32.totalorder %s58, %s72
      %p74 = scmp.eq.s32.totalorder %s27, 0
      %p75 = por %p73, %p74
      %s77 = sadd.s32 %s76, 1
      %p80 = scmp.eq.s32.totalorder %s21, 1
      %p81 = scmp.ne.s32.totalorder %s76, %s78
      %p82 = scmp.eq.s32.totalorder %s21, 0
      %p83 = por %p81, %p82
      %p84 = scmp.ne.s32.totalorder %s76, %s78
      %p85 = scmp.eq.s32.totalorder %s26, 1
      %p86 = por %p84, %p85
      %p87 = scmp.ne.s32.totalorder %s78, %s79
      %p88 = scmp.eq.s32.totalorder %s26, 0
      %p89 = por %p87, %p88
      %p90 = scmp.ne.s32.totalorder %s78, %s79
      %p91 = scmp.eq.s32.totalorder %s27, 1
      %p92 = por %p90, %p91
      %p94 = scmp.ne.s32.totalorder %s79, %s93
      %p95 = scmp.eq.s32.totalorder %s27, 0
      %p96 = por %p94, %p95
      %s98 = sadd.s32 %s97, 1
      %p101 = scmp.eq.s32.totalorder %s21, 1
      %p102 = scmp.ne.s32.totalorder %s97, %s99
      %p103 = scmp.eq.s32.totalorder %s21, 0
      %p104 = por %p102, %p103
      %p105 = scmp.ne.s32.totalorder %s97, %s99
      %p106 = scmp.eq.s32.totalorder %s26, 1
      %p107 = por %p105, %p106
      %p108 = scmp.ne.s32.totalorder %s99, %s100
      %p109 = scmp.eq.s32.totalorder %s26, 0
      %p110 = por %p108, %p109
      %p111 = scmp.ne.s32.totalorder %s99, %s100
      %p112 = scmp.eq.s32.totalorder %s27, 1
      %p113 = por %p111, %p112
      %p115 = scmp.ne.s32.totalorder %s100, %s114
      %p116 = scmp.eq.s32.totalorder %s27, 0
      %p117 = por %p115, %p116
      %s119 = sadd.s32 %s118, 1
      %p122 = scmp.eq.s32.totalorder %s21, 1
      %p123 = scmp.ne.s32.totalorder %s118, %s120
      %p124 = scmp.eq.s32.totalorder %s21, 0
      %p125 = por %p123, %p124
      %p126 = scmp.ne.s32.totalorder %s118, %s120
      %p127 = scmp.eq.s32.totalorder %s26, 1
      %p128 = por %p126, %p127
      %p129 = scmp.ne.s32.totalorder %s120, %s121
      %p130 = scmp.eq.s32.totalorder %s26, 0
      %p131 = por %p129, %p130
      %p132 = scmp.ne.s32.totalorder %s120, %s121
      %p133 = scmp.eq.s32.totalorder %s27, 1
      %p134 = por %p132, %p133
      %p136 = scmp.ne.s32.totalorder %s121, %s135
      %p137 = scmp.eq.s32.totalorder %s27, 0
      %p138 = por %p136, %p137
      %s140 = sadd.s32 %s139, 1
      %p143 = scmp.eq.s32.totalorder %s21, 1
      %p144 = scmp.ne.s32.totalorder %s139, %s141
      %p145 = scmp.eq.s32.totalorder %s21, 0
      %p146 = por %p144, %p145
      %p147 = scmp.ne.s32.totalorder %s139, %s141
      %p148 = scmp.eq.s32.totalorder %s26, 1
      %p149 = por %p147, %p148
      %p150 = scmp.ne.s32.totalorder %s141, %s142
      %p151 = scmp.eq.s32.totalorder %s26, 0
      %p152 = por %p150, %p151
      %p153 = scmp.ne.s32.totalorder %s141, %s142
      %p154 = scmp.eq.s32.totalorder %s27, 1
      %p155 = por %p153, %p154
      %p157 = scmp.ne.s32.totalorder %s142, %s156
      %p158 = scmp.eq.s32.totalorder %s27, 0
      %p159 = por %p157, %p158
      %s161 = sadd.s32 %s160, 1
      %p164 = scmp.eq.s32.totalorder %s21, 1
      %p165 = scmp.ne.s32.totalorder %s160, %s162
      %p166 = scmp.eq.s32.totalorder %s21, 0
      %p167 = por %p165, %p166
      %p168 = scmp.ne.s32.totalorder %s160, %s162
      %p169 = scmp.eq.s32.totalorder %s26, 1
      %p170 = por %p168, %p169
      %p171 = scmp.ne.s32.totalorder %s162, %s163
      %p172 = scmp.eq.s32.totalorder %s26, 0
      %p173 = por %p171, %p172
      %p174 = scmp.ne.s32.totalorder %s162, %s163
      %p175 = scmp.eq.s32.totalorder %s27, 1
      %p176 = por %p174, %p175
      %p178 = scmp.ne.s32.totalorder %s163, %s177
      %p179 = scmp.eq.s32.totalorder %s27, 0
      %p180 = por %p178, %p179
      %s181 = ssub.s32 %s21, %s28
      %p182 = scmp.eq.s32.totalorder %s181, 0
      %s184 = sadd.s32 %s183, 1
      %s185 = scalar_select %p182, %s183, %s184
      %p188 = pneg %p182
      %p189 = scmp.eq.s32.totalorder %s21, 1
      %p190 = por %p188, %p189
      %p191 = scmp.ne.s32.totalorder %s183, %s186
      %p192 = scmp.eq.s32.totalorder %s21, 0
      %p193 = por %p191, %p192
      %p194 = scmp.ne.s32.totalorder %s183, %s186
      %p195 = scmp.eq.s32.totalorder %s26, 1
      %p196 = por %p194, %p195
      %p197 = scmp.ne.s32.totalorder %s186, %s187
      %p198 = scmp.eq.s32.totalorder %s26, 0
      %p199 = por %p197, %p198
      %p200 = scmp.ne.s32.totalorder %s186, %s187
      %p201 = scmp.eq.s32.totalorder %s27, 1
      %p202 = por %p200, %p201
      %p204 = scmp.ne.s32.totalorder %s187, %s203
      %p205 = scmp.eq.s32.totalorder %s27, 0
      %p206 = por %p204, %p205
      %p207 = scmp.le.s32.totalorder 1, %s21
      %p208 = scmp.lt.s32.totalorder %s21, 3
      %p209 = pnand %p207, %p208
      %p210 = pneg %p209
      // Predicated region
      $region9: #{tpu_custom_call.1} parent=5 // pred_check
        _
      $region10: #{tpu_custom_call.1} parent=5 // pred_check_branch
        %212 = sbr.rel (%p209) target = $region12
      $region11: #{tpu_custom_call.1} parent=5 // pred_region
        %s213 = ssub.s32 %s21, 1
        // Predicated region
        $region13: #{tpu_custom_call.1} parent=11 // pred_check
          %p214 = pneg %p68
        $region14: #{tpu_custom_call.1} parent=11 // pred_check_branch
          %216 = sbr.rel (%p214) target = $region16
        $region15: #{tpu_custom_call.1} parent=11 // pred_region
          %s218 = ssub.s32 2048, 2048
          %219 = vsyncadd [#allocation6], %s218
          %s220 = sshll.u32 [#allocation5], 4
          %s221 = int_to_ptr.vmem [resolvable:$true] %s220
          %226 = dma.hbm_to_vmem [thread:$0]  %s1, 2048, %s221, [#allocation6], 128, 128, 8
        $region16: #{tpu_custom_call.1} parent=11 // pred_fallthru
          _
        // Predicated region
        $region17: #{tpu_custom_call.1} parent=11 // pred_check
          %p227 = pneg %p89
        $region18: #{tpu_custom_call.1} parent=11 // pred_check_branch
          %229 = sbr.rel (%p227) target = $region20
        $region19: #{tpu_custom_call.1} parent=11 // pred_region
          %s231 = ssub.s32 2048, 2048
          %232 = vsyncadd [#allocation6], %s231
          %s233 = sshll.u32 [#allocation7], 4
          %s234 = int_to_ptr.vmem [resolvable:$true] %s233
          %239 = dma.hbm_to_vmem [thread:$0]  %s2, 2048, %s234, [#allocation6], 128, 128, 8
        $region20: #{tpu_custom_call.1} parent=11 // pred_fallthru
          _
        // Predicated region
        $region21: #{tpu_custom_call.1} parent=11 // pred_check
          %p240 = pneg %p110
        $region22: #{tpu_custom_call.1} parent=11 // pred_check_branch
          %242 = sbr.rel (%p240) target = $region24
        $region23: #{tpu_custom_call.1} parent=11 // pred_region
          %s244 = ssub.s32 2048, 2048
          %245 = vsyncadd [#allocation9], %s244
          %s246 = sshll.u32 [#allocation8], 4
          %s247 = int_to_ptr.vmem [resolvable:$true] %s246
          %252 = dma.hbm_to_vmem [thread:$0]  %s3, 2048, %s247, [#allocation9], 128, 128, 8
        $region24: #{tpu_custom_call.1} parent=11 // pred_fallthru
          _
        // Predicated region
        $region25: #{tpu_custom_call.1} parent=11 // pred_check
          %p253 = pneg %p131
        $region26: #{tpu_custom_call.1} parent=11 // pred_check_branch
          %255 = sbr.rel (%p253) target = $region28
        $region27: #{tpu_custom_call.1} parent=11 // pred_region
          %s257 = ssub.s32 2048, 2048
          %258 = vsyncadd [#allocation9], %s257
          %s259 = sshll.u32 [#allocation10], 4
          %s260 = int_to_ptr.vmem [resolvable:$true] %s259
          %265 = dma.hbm_to_vmem [thread:$0]  %s4, 2048, %s260, [#allocation9], 128, 128, 8
        $region28: #{tpu_custom_call.1} parent=11 // pred_fallthru
          _
        // Predicated region
        $region29: #{tpu_custom_call.1} parent=11 // pred_check
          %p266 = pneg %p152
        $region30: #{tpu_custom_call.1} parent=11 // pred_check_branch
          %268 = sbr.rel (%p266) target = $region32
        $region31: #{tpu_custom_call.1} parent=11 // pred_region
          _
        $region32: #{tpu_custom_call.1} parent=11 // pred_fallthru
          _
        // Predicated region
        $region33: #{tpu_custom_call.1} parent=11 // pred_check
          %p269 = pneg %p173
        $region34: #{tpu_custom_call.1} parent=11 // pred_check_branch
          %271 = sbr.rel (%p269) target = $region36
        $region35: #{tpu_custom_call.1} parent=11 // pred_region
          _
        $region36: #{tpu_custom_call.1} parent=11 // pred_fallthru
          _
      $region12: #{tpu_custom_call.1} parent=5 // pred_fallthru
        _
      %p272 = scmp.lt.s32.totalorder %s21, 2
      // Predicated region
      $region37: #{tpu_custom_call.1} parent=5 // pred_check
        %p273 = pneg %p272
      $region38: #{tpu_custom_call.1} parent=5 // pred_check_branch
        %275 = sbr.rel (%p273) target = $region40
      $region39: #{tpu_custom_call.1} parent=5 // pred_region
        // Predicated region
        $region41: #{tpu_custom_call.1} parent=39 // pred_check
          %p276 = pneg %p41
        $region42: #{tpu_custom_call.1} parent=39 // pred_check_branch
          %278 = sbr.rel (%p276) target = $region44
        $region43: #{tpu_custom_call.1} parent=39 // pred_region
          %s279 = sand.u32 %s31, 1
          %s280 = scalar_lea.sflag [#allocation3], %s279
          %s281 = sand.u32 %s31, 1
          %s282 = smul.addr %s281, 8
          %s283 = scalar_lea.vmem [#allocation2], %s282
          %s285 = ssub.s32 128, 128
          %286 = vsyncadd %s280, %s285
          %s287 = smul.addr %s21, 128
          %s288 = scalar_lea.hbm %s0, %s287
          %s290 = sshll.u32 %s283, 4
          %s291 = int_to_ptr.vmem [resolvable:$true] %s290
          %293 = dma.hbm_to_vmem [thread:$0]  %s288, 128, %s291, %s280
        $region44: #{tpu_custom_call.1} parent=39 // pred_fallthru
          _
      $region40: #{tpu_custom_call.1} parent=5 // pred_fallthru
        _
      %p294 = scmp.le.s32.totalorder 1, %s21
      %p295 = scmp.lt.s32.totalorder %s21, 3
      %p296 = pnand %p294, %p295
      %p297 = pneg %p296
      // Predicated region
      $region45: #{tpu_custom_call.1} parent=5 // pred_check
        _
      $region46: #{tpu_custom_call.1} parent=5 // pred_check_branch
        %299 = sbr.rel (%p296) target = $region48
      $region47: #{tpu_custom_call.1} parent=5 // pred_region
        %s300 = ssub.s32 %s21, 1
        %s301 = sand.u32 %s34, 1
        %s302 = scalar_lea.sflag [#allocation3], %s301
        %s303 = sand.u32 %s34, 1
        %s304 = smul.addr %s303, 8
        %s305 = scalar_lea.vmem [#allocation2], %s304
        // Predicated region
        $region49: #{tpu_custom_call.1} parent=47 // pred_check
          %p306 = pneg %p47
        $region50: #{tpu_custom_call.1} parent=47 // pred_check_branch
          %308 = sbr.rel (%p306) target = $region52
        $region51: #{tpu_custom_call.1} parent=47 // pred_region
          %309 = dma.done %s302, 128
        $region52: #{tpu_custom_call.1} parent=47 // pred_fallthru
          _
        // Predicated region
        $region53: #{tpu_custom_call.1} parent=47 // pred_check
          %p310 = pneg %p68
        $region54: #{tpu_custom_call.1} parent=47 // pred_check_branch
          %312 = sbr.rel (%p310) target = $region56
        $region55: #{tpu_custom_call.1} parent=47 // pred_region
          %313 = dma.done [#allocation6], 2048
        $region56: #{tpu_custom_call.1} parent=47 // pred_fallthru
          _
        // Predicated region
        $region57: #{tpu_custom_call.1} parent=47 // pred_check
          %p314 = pneg %p89
        $region58: #{tpu_custom_call.1} parent=47 // pred_check_branch
          %316 = sbr.rel (%p314) target = $region60
        $region59: #{tpu_custom_call.1} parent=47 // pred_region
          %317 = dma.done [#allocation6], 2048
        $region60: #{tpu_custom_call.1} parent=47 // pred_fallthru
          _
        // Predicated region
        $region61: #{tpu_custom_call.1} parent=47 // pred_check
          %p318 = pneg %p110
        $region62: #{tpu_custom_call.1} parent=47 // pred_check_branch
          %320 = sbr.rel (%p318) target = $region64
        $region63: #{tpu_custom_call.1} parent=47 // pred_region
          %321 = dma.done [#allocation9], 2048
        $region64: #{tpu_custom_call.1} parent=47 // pred_fallthru
          _
        // Predicated region
        $region65: #{tpu_custom_call.1} parent=47 // pred_check
          %p322 = pneg %p131
        $region66: #{tpu_custom_call.1} parent=47 // pred_check_branch
          %324 = sbr.rel (%p322) target = $region68
        $region67: #{tpu_custom_call.1} parent=47 // pred_region
          %325 = dma.done [#allocation9], 2048
        $region68: #{tpu_custom_call.1} parent=47 // pred_fallthru
          _
        %s326 = sand.u32 %s34, 1
        %s327 = scalar_lea.sflag [#allocation3], %s326
        %s328 = sand.u32 %s34, 1
        %s329 = smul.addr %s328, 8
        %s330 = scalar_lea.vmem [#allocation2], %s329
        %p331 = pneg %p47
        %p332 = pneg %p44
        %p333 = pneg %p68
        %p334 = pneg %p65
        %p335 = pneg %p89
        %p336 = pneg %p86
        %p337 = pneg %p110
        %p338 = pneg %p107
        %p339 = pneg %p131
        %p340 = pneg %p128
        %p341 = pneg %p152
        %p342 = pneg %p149
        %p343 = pneg %p173
        %p344 = pneg %p170
        %p345 = pneg %p199
        %p346 = pneg %p196
        %s347 = sand.u32 %s186, 1
        %s348 = scalar_lea.sflag [#allocation4], %s347
        %s349 = sand.u32 %s186, 1
        %s350 = smul.addr %s349, 8
        %s351 = scalar_lea.vmem [#allocation11], %s350
        %v352 = vld [vmem:[%s5] sm:$0xff]
        %v353 = vld [vmem:[%s5 + $0x8] sm:$0xff]
        %v354 = vld [vmem:[%s305] sm:$0xff]
        %v355 = vld [vmem:[#allocation5] sm:$0xff]
        %v356 = vld [vmem:[#allocation5 + $0x8] sm:$0xff]
        %v357 = vld [vmem:[#allocation5 + $0x10] sm:$0xff]
        %v358 = vld [vmem:[#allocation5 + $0x18] sm:$0xff]
        %v359 = vld [vmem:[#allocation5 + $0x20] sm:$0xff]
        %v360 = vld [vmem:[#allocation5 + $0x28] sm:$0xff]
        %v361 = vld [vmem:[#allocation5 + $0x30] sm:$0xff]
        %v362 = vld [vmem:[#allocation5 + $0x38] sm:$0xff]
        %v363 = vld [vmem:[#allocation5 + $0x40] sm:$0xff]
        %v364 = vld [vmem:[#allocation5 + $0x48] sm:$0xff]
        %v365 = vld [vmem:[#allocation5 + $0x50] sm:$0xff]
        %v366 = vld [vmem:[#allocation5 + $0x58] sm:$0xff]
        %v367 = vld [vmem:[#allocation5 + $0x60] sm:$0xff]
        %v368 = vld [vmem:[#allocation5 + $0x68] sm:$0xff]
        %v369 = vld [vmem:[#allocation5 + $0x70] sm:$0xff]
        %v370 = vld [vmem:[#allocation5 + $0x78] sm:$0xff]
        %v371 = vlaneseq
        %v372 = vshrl.u32 %v371, 7
        %v373 = vsub.s32 0, %v372
        %v374 = vrot.slane %v352, %v373
        %375 = vmatprep.subr.mxu0 0.0
        %376 = vmatpush1.msra.mxu0 %v355
        %377 = vmatprep.subr.mxu0 0.0
        %378 = vmatpush1.msra.mxu0 %v356
        %379 = vmatprep.subr.mxu0 0.0
        %380 = vmatpush1.msra.mxu0 %v357
        %381 = vmatprep.subr.mxu0 0.0
        %382 = vmatpush1.msra.mxu0 %v358
        %383 = vmatprep.subr.mxu0 0.0
        %384 = vmatpush1.msra.mxu0 %v359
        %385 = vmatprep.subr.mxu0 0.0
        %386 = vmatpush1.msra.mxu0 %v360
        %387 = vmatprep.subr.mxu0 0.0
        %388 = vmatpush1.msra.mxu0 %v361
        %389 = vmatprep.subr.mxu0 0.0
        %390 = vmatpush1.msra.mxu0 %v362
        %391 = vmatprep.subr.mxu0 0.0
        %392 = vmatpush1.msra.mxu0 %v363
        %393 = vmatprep.subr.mxu0 0.0
        %394 = vmatpush1.msra.mxu0 %v364
        %395 = vmatprep.subr.mxu0 0.0
        %396 = vmatpush1.msra.mxu0 %v365
        %397 = vmatprep.subr.mxu0 0.0
        %398 = vmatpush1.msra.mxu0 %v366
        %399 = vmatprep.subr.mxu0 0.0
        %400 = vmatpush1.msra.mxu0 %v367
        %401 = vmatprep.subr.mxu0 0.0
        %402 = vmatpush1.msra.mxu0 %v368
        %403 = vmatprep.subr.mxu0 0.0
        %404 = vmatpush1.msra.mxu0 %v369
        %405 = vmatprep.subr.mxu0 0.0
        %406 = vmatpush1.msra.mxu0 %v370
        %407 = vmatprep.subr.mxu0 0.0
        %408 = vmatpush1.msra.mxu0 0.0
        %409 = vmatprep.subr.mxu0 0.0
        %410 = vmatpush1.msra.mxu0 0.0
        %411 = vmatprep.subr.mxu0 0.0
        %412 = vmatpush1.msra.mxu0 0.0
        %413 = vmatprep.subr.mxu0 0.0
        %414 = vmatpush1.msra.mxu0 0.0
        %415 = vmatprep.subr.mxu0 0.0
        %416 = vmatpush1.msra.mxu0 0.0
        %417 = vmatprep.subr.mxu0 0.0
        %418 = vmatpush1.msra.mxu0 0.0
        %419 = vmatprep.subr.mxu0 0.0
        %420 = vmatpush1.msra.mxu0 0.0
        %421 = vmatprep.subr.mxu0 0.0
        %422 = vmatpush1.msra.mxu0 0.0
        %423 = vmatprep.subr.mxu0 0.0
        %424 = vmatpush1.msra.mxu0 0.0
        %425 = vmatprep.subr.mxu0 0.0
        %426 = vmatpush1.msra.mxu0 0.0
        %427 = vmatprep.subr.mxu0 0.0
        %428 = vmatpush1.msra.mxu0 0.0
        %429 = vmatprep.subr.mxu0 0.0
        %430 = vmatpush1.msra.mxu0 0.0
        %431 = vmatprep.subr.mxu0 0.0
        %432 = vmatpush1.msra.mxu0 0.0
        %433 = vmatprep.subr.mxu0 0.0
        %434 = vmatpush1.msra.mxu0 0.0
        %435 = vmatprep.subr.mxu0 0.0
        %436 = vmatpush1.msra.mxu0 0.0
        %437 = vmatprep.subr.mxu0 0.0
        %438 = vmatpush1.msra.mxu0 0.0
        %439 = vmatprep.mubr.f32.mxu0 0.0
        %440 = vmatmul.mubr.f32.gmra.mrb[0].mxu0 %v354
        %v441 = vpop.f32.mrb[0].mxu0
        %v442 = vadd.f32 %v374, %v441
        %v443 = vpop.f32.mrb[0].mxu0
        %444 = vdwg.mxu0
        %v445 = vmul.f32 %v442, 0.2
        %v446 = vmax.f32 %v442, %v445
        %447 = vadd.xlane.f32.xlu0 %v446
        %v448 = vpop.xlane.xlu0 %447
        %v449 = vmul.f32 %v448, 0.0078125
        %v450 = vsub.f32 %v446, %v449
        %v451 = vmul.f32 %v450, %v450
        %452 = vadd.xlane.f32.xlu0 %v451
        %v453 = vpop.xlane.xlu0 %452
        %v454 = vmul.f32 %v453, 0.0078125
        %v455 = vadd.f32 %v454, 1e-05
        %v456 = vrsqrt.pop %v455
        %v457 = vmul.f32 %v450, %v456
        %v458 = vlaneseq
        %v459 = vshrl.u32 %v458, 7
        %v460 = vsub.s32 1, %v459
        %v461 = vrot.slane %v352, %v460
        %v462 = vmul.f32 %v457, %v461
        %v463 = vlaneseq
        %v464 = vshrl.u32 %v463, 7
        %v465 = vsub.s32 2, %v464
        %v466 = vrot.slane %v352, %v465
        %v467 = vadd.f32 %v462, %v466
        %v468 = vld [vmem:[#allocation7] sm:$0xff]
        %v469 = vld [vmem:[#allocation7 + $0x8] sm:$0xff]
        %v470 = vld [vmem:[#allocation7 + $0x10] sm:$0xff]
        %v471 = vld [vmem:[#allocation7 + $0x18] sm:$0xff]
        %v472 = vld [vmem:[#allocation7 + $0x20] sm:$0xff]
        %v473 = vld [vmem:[#allocation7 + $0x28] sm:$0xff]
        %v474 = vld [vmem:[#allocation7 + $0x30] sm:$0xff]
        %v475 = vld [vmem:[#allocation7 + $0x38] sm:$0xff]
        %v476 = vld [vmem:[#allocation7 + $0x40] sm:$0xff]
        %v477 = vld [vmem:[#allocation7 + $0x48] sm:$0xff]
        %v478 = vld [vmem:[#allocation7 + $0x50] sm:$0xff]
        %v479 = vld [vmem:[#allocation7 + $0x58] sm:$0xff]
        %v480 = vld [vmem:[#allocation7 + $0x60] sm:$0xff]
        %v481 = vld [vmem:[#allocation7 + $0x68] sm:$0xff]
        %v482 = vld [vmem:[#allocation7 + $0x70] sm:$0xff]
        %v483 = vld [vmem:[#allocation7 + $0x78] sm:$0xff]
        %v484 = vlaneseq
        %v485 = vshrl.u32 %v484, 7
        %v486 = vsub.s32 3, %v485
        %v487 = vrot.slane %v352, %v486
        %488 = vmatprep.subr.mxu0 0.0
        %489 = vmatpush1.msra.mxu0 %v468
        %490 = vmatprep.subr.mxu0 0.0
        %491 = vmatpush1.msra.mxu0 %v469
        %492 = vmatprep.subr.mxu0 0.0
        %493 = vmatpush1.msra.mxu0 %v470
        %494 = vmatprep.subr.mxu0 0.0
        %495 = vmatpush1.msra.mxu0 %v471
        %496 = vmatprep.subr.mxu0 0.0
        %497 = vmatpush1.msra.mxu0 %v472
        %498 = vmatprep.subr.mxu0 0.0
        %499 = vmatpush1.msra.mxu0 %v473
        %500 = vmatprep.subr.mxu0 0.0
        %501 = vmatpush1.msra.mxu0 %v474
        %502 = vmatprep.subr.mxu0 0.0
        %503 = vmatpush1.msra.mxu0 %v475
        %504 = vmatprep.subr.mxu0 0.0
        %505 = vmatpush1.msra.mxu0 %v476
        %506 = vmatprep.subr.mxu0 0.0
        %507 = vmatpush1.msra.mxu0 %v477
        %508 = vmatprep.subr.mxu0 0.0
        %509 = vmatpush1.msra.mxu0 %v478
        %510 = vmatprep.subr.mxu0 0.0
        %511 = vmatpush1.msra.mxu0 %v479
        %512 = vmatprep.subr.mxu0 0.0
        %513 = vmatpush1.msra.mxu0 %v480
        %514 = vmatprep.subr.mxu0 0.0
        %515 = vmatpush1.msra.mxu0 %v481
        %516 = vmatprep.subr.mxu0 0.0
        %517 = vmatpush1.msra.mxu0 %v482
        %518 = vmatprep.subr.mxu0 0.0
        %519 = vmatpush1.msra.mxu0 %v483
        %520 = vmatprep.subr.mxu0 0.0
        %521 = vmatpush1.msra.mxu0 0.0
        %522 = vmatprep.subr.mxu0 0.0
        %523 = vmatpush1.msra.mxu0 0.0
        %524 = vmatprep.subr.mxu0 0.0
        %525 = vmatpush1.msra.mxu0 0.0
        %526 = vmatprep.subr.mxu0 0.0
        %527 = vmatpush1.msra.mxu0 0.0
        %528 = vmatprep.subr.mxu0 0.0
        %529 = vmatpush1.msra.mxu0 0.0
        %530 = vmatprep.subr.mxu0 0.0
        %531 = vmatpush1.msra.mxu0 0.0
        %532 = vmatprep.subr.mxu0 0.0
        %533 = vmatpush1.msra.mxu0 0.0
        %534 = vmatprep.subr.mxu0 0.0
        %535 = vmatpush1.msra.mxu0 0.0
        %536 = vmatprep.subr.mxu0 0.0
        %537 = vmatpush1.msra.mxu0 0.0
        %538 = vmatprep.subr.mxu0 0.0
        %539 = vmatpush1.msra.mxu0 0.0
        %540 = vmatprep.subr.mxu0 0.0
        %541 = vmatpush1.msra.mxu0 0.0
        %542 = vmatprep.subr.mxu0 0.0
        %543 = vmatpush1.msra.mxu0 0.0
        %544 = vmatprep.subr.mxu0 0.0
        %545 = vmatpush1.msra.mxu0 0.0
        %546 = vmatprep.subr.mxu0 0.0
        %547 = vmatpush1.msra.mxu0 0.0
        %548 = vmatprep.subr.mxu0 0.0
        %549 = vmatpush1.msra.mxu0 0.0
        %550 = vmatprep.subr.mxu0 0.0
        %551 = vmatpush1.msra.mxu0 0.0
        %552 = vmatprep.mubr.f32.mxu0 0.0
        %553 = vmatmul.mubr.f32.gmra.mrb[0].mxu0 %v467
        %v554 = vpop.f32.mrb[0].mxu0
        %v555 = vadd.f32 %v487, %v554
        %v556 = vpop.f32.mrb[0].mxu0
        %557 = vdwg.mxu0
        %v558 = vmul.f32 %v555, 0.2
        %v559 = vmax.f32 %v555, %v558
        %560 = vadd.xlane.f32.xlu0 %v559
        %v561 = vpop.xlane.xlu0 %560
        %v562 = vmul.f32 %v561, 0.0078125
        %v563 = vsub.f32 %v559, %v562
        %v564 = vmul.f32 %v563, %v563
        %565 = vadd.xlane.f32.xlu0 %v564
        %v566 = vpop.xlane.xlu0 %565
        %v567 = vmul.f32 %v566, 0.0078125
        %v568 = vadd.f32 %v567, 1e-05
        %v569 = vrsqrt.pop %v568
        %v570 = vmul.f32 %v563, %v569
        %v571 = vlaneseq
        %v572 = vshrl.u32 %v571, 7
        %v573 = vsub.s32 4, %v572
        %v574 = vrot.slane %v352, %v573
        %v575 = vmul.f32 %v570, %v574
        %v576 = vlaneseq
        %v577 = vshrl.u32 %v576, 7
        %v578 = vsub.s32 5, %v577
        %v579 = vrot.slane %v352, %v578
        %v580 = vadd.f32 %v575, %v579
        %v581 = vld [vmem:[#allocation8] sm:$0xff]
        %v582 = vld [vmem:[#allocation8 + $0x8] sm:$0xff]
        %v583 = vld [vmem:[#allocation8 + $0x10] sm:$0xff]
        %v584 = vld [vmem:[#allocation8 + $0x18] sm:$0xff]
        %v585 = vld [vmem:[#allocation8 + $0x20] sm:$0xff]
        %v586 = vld [vmem:[#allocation8 + $0x28] sm:$0xff]
        %v587 = vld [vmem:[#allocation8 + $0x30] sm:$0xff]
        %v588 = vld [vmem:[#allocation8 + $0x38] sm:$0xff]
        %v589 = vld [vmem:[#allocation8 + $0x40] sm:$0xff]
        %v590 = vld [vmem:[#allocation8 + $0x48] sm:$0xff]
        %v591 = vld [vmem:[#allocation8 + $0x50] sm:$0xff]
        %v592 = vld [vmem:[#allocation8 + $0x58] sm:$0xff]
        %v593 = vld [vmem:[#allocation8 + $0x60] sm:$0xff]
        %v594 = vld [vmem:[#allocation8 + $0x68] sm:$0xff]
        %v595 = vld [vmem:[#allocation8 + $0x70] sm:$0xff]
        %v596 = vld [vmem:[#allocation8 + $0x78] sm:$0xff]
        %v597 = vlaneseq
        %v598 = vshrl.u32 %v597, 7
        %v599 = vsub.s32 6, %v598
        %v600 = vrot.slane %v352, %v599
        %601 = vmatprep.subr.mxu0 0.0
        %602 = vmatpush1.msra.mxu0 %v581
        %603 = vmatprep.subr.mxu0 0.0
        %604 = vmatpush1.msra.mxu0 %v582
        %605 = vmatprep.subr.mxu0 0.0
        %606 = vmatpush1.msra.mxu0 %v583
        %607 = vmatprep.subr.mxu0 0.0
        %608 = vmatpush1.msra.mxu0 %v584
        %609 = vmatprep.subr.mxu0 0.0
        %610 = vmatpush1.msra.mxu0 %v585
        %611 = vmatprep.subr.mxu0 0.0
        %612 = vmatpush1.msra.mxu0 %v586
        %613 = vmatprep.subr.mxu0 0.0
        %614 = vmatpush1.msra.mxu0 %v587
        %615 = vmatprep.subr.mxu0 0.0
        %616 = vmatpush1.msra.mxu0 %v588
        %617 = vmatprep.subr.mxu0 0.0
        %618 = vmatpush1.msra.mxu0 %v589
        %619 = vmatprep.subr.mxu0 0.0
        %620 = vmatpush1.msra.mxu0 %v590
        %621 = vmatprep.subr.mxu0 0.0
        %622 = vmatpush1.msra.mxu0 %v591
        %623 = vmatprep.subr.mxu0 0.0
        %624 = vmatpush1.msra.mxu0 %v592
        %625 = vmatprep.subr.mxu0 0.0
        %626 = vmatpush1.msra.mxu0 %v593
        %627 = vmatprep.subr.mxu0 0.0
        %628 = vmatpush1.msra.mxu0 %v594
        %629 = vmatprep.subr.mxu0 0.0
        %630 = vmatpush1.msra.mxu0 %v595
        %631 = vmatprep.subr.mxu0 0.0
        %632 = vmatpush1.msra.mxu0 %v596
        %633 = vmatprep.subr.mxu0 0.0
        %634 = vmatpush1.msra.mxu0 0.0
        %635 = vmatprep.subr.mxu0 0.0
        %636 = vmatpush1.msra.mxu0 0.0
        %637 = vmatprep.subr.mxu0 0.0
        %638 = vmatpush1.msra.mxu0 0.0
        %639 = vmatprep.subr.mxu0 0.0
        %640 = vmatpush1.msra.mxu0 0.0
        %641 = vmatprep.subr.mxu0 0.0
        %642 = vmatpush1.msra.mxu0 0.0
        %643 = vmatprep.subr.mxu0 0.0
        %644 = vmatpush1.msra.mxu0 0.0
        %645 = vmatprep.subr.mxu0 0.0
        %646 = vmatpush1.msra.mxu0 0.0
        %647 = vmatprep.subr.mxu0 0.0
        %648 = vmatpush1.msra.mxu0 0.0
        %649 = vmatprep.subr.mxu0 0.0
        %650 = vmatpush1.msra.mxu0 0.0
        %651 = vmatprep.subr.mxu0 0.0
        %652 = vmatpush1.msra.mxu0 0.0
        %653 = vmatprep.subr.mxu0 0.0
        %654 = vmatpush1.msra.mxu0 0.0
        %655 = vmatprep.subr.mxu0 0.0
        %656 = vmatpush1.msra.mxu0 0.0
        %657 = vmatprep.subr.mxu0 0.0
        %658 = vmatpush1.msra.mxu0 0.0
        %659 = vmatprep.subr.mxu0 0.0
        %660 = vmatpush1.msra.mxu0 0.0
        %661 = vmatprep.subr.mxu0 0.0
        %662 = vmatpush1.msra.mxu0 0.0
        %663 = vmatprep.subr.mxu0 0.0
        %664 = vmatpush1.msra.mxu0 0.0
        %665 = vmatprep.mubr.f32.mxu0 0.0
        %666 = vmatmul.mubr.f32.gmra.mrb[0].mxu0 %v580
        %v667 = vpop.f32.mrb[0].mxu0
        %v668 = vadd.f32 %v600, %v667
        %v669 = vpop.f32.mrb[0].mxu0
        %670 = vdwg.mxu0
        %v671 = vmul.f32 %v668, 0.2
        %v672 = vmax.f32 %v668, %v671
        %673 = vadd.xlane.f32.xlu0 %v672
        %v674 = vpop.xlane.xlu0 %673
        %v675 = vmul.f32 %v674, 0.0078125
        %v676 = vsub.f32 %v672, %v675
        %v677 = vmul.f32 %v676, %v676
        %678 = vadd.xlane.f32.xlu0 %v677
        %v679 = vpop.xlane.xlu0 %678
        %v680 = vmul.f32 %v679, 0.0078125
        %v681 = vadd.f32 %v680, 128.0
        %v682 = vrsqrt.pop %v681
        %v683 = vmul.f32 %v676, %v682
        %v684 = vlaneseq
        %v685 = vshrl.u32 %v684, 7
        %v686 = vsub.s32 7, %v685
        %v687 = vrot.slane %v352, %v686
        %v688 = vmul.f32 %v683, %v687
        %v689 = vlaneseq
        %v690 = vshrl.u32 %v689, 7
        %v691 = vsub.s32 0, %v690
        %v692 = vrot.slane %v353, %v691
        %v693 = vadd.f32 %v688, %v692
        %v694 = vld [vmem:[#allocation10] sm:$0xff]
        %v695 = vld [vmem:[#allocation10 + $0x8] sm:$0xff]
        %v696 = vld [vmem:[#allocation10 + $0x10] sm:$0xff]
        %v697 = vld [vmem:[#allocation10 + $0x18] sm:$0xff]
        %v698 = vld [vmem:[#allocation10 + $0x20] sm:$0xff]
        %v699 = vld [vmem:[#allocation10 + $0x28] sm:$0xff]
        %v700 = vld [vmem:[#allocation10 + $0x30] sm:$0xff]
        %v701 = vld [vmem:[#allocation10 + $0x38] sm:$0xff]
        %v702 = vld [vmem:[#allocation10 + $0x40] sm:$0xff]
        %v703 = vld [vmem:[#allocation10 + $0x48] sm:$0xff]
        %v704 = vld [vmem:[#allocation10 + $0x50] sm:$0xff]
        %v705 = vld [vmem:[#allocation10 + $0x58] sm:$0xff]
        %v706 = vld [vmem:[#allocation10 + $0x60] sm:$0xff]
        %v707 = vld [vmem:[#allocation10 + $0x68] sm:$0xff]
        %v708 = vld [vmem:[#allocation10 + $0x70] sm:$0xff]
        %v709 = vld [vmem:[#allocation10 + $0x78] sm:$0xff]
        %v710 = vld [vmem:[%s6] sm:$0x1]
        %v712 = vlaneseq
        %v713 = vshrl.u32 %v712, 7
        %v714 = vsub.s32 0, %v713
        %v715 = vrot.slane %v710, %v714
        %717 = vmatprep.subr.mxu0 0.0
        %718 = vmatpush1.msra.mxu0 %v694
        %719 = vmatprep.subr.mxu0 0.0
        %720 = vmatpush1.msra.mxu0 %v695
        %721 = vmatprep.subr.mxu0 0.0
        %722 = vmatpush1.msra.mxu0 %v696
        %723 = vmatprep.subr.mxu0 0.0
        %724 = vmatpush1.msra.mxu0 %v697
        %725 = vmatprep.subr.mxu0 0.0
        %726 = vmatpush1.msra.mxu0 %v698
        %727 = vmatprep.subr.mxu0 0.0
        %728 = vmatpush1.msra.mxu0 %v699
        %729 = vmatprep.subr.mxu0 0.0
        %730 = vmatpush1.msra.mxu0 %v700
        %731 = vmatprep.subr.mxu0 0.0
        %732 = vmatpush1.msra.mxu0 %v701
        %733 = vmatprep.subr.mxu0 0.0
        %734 = vmatpush1.msra.mxu0 %v702
        %735 = vmatprep.subr.mxu0 0.0
        %736 = vmatpush1.msra.mxu0 %v703
        %737 = vmatprep.subr.mxu0 0.0
        %738 = vmatpush1.msra.mxu0 %v704
        %739 = vmatprep.subr.mxu0 0.0
        %740 = vmatpush1.msra.mxu0 %v705
        %741 = vmatprep.subr.mxu0 0.0
        %742 = vmatpush1.msra.mxu0 %v706
        %743 = vmatprep.subr.mxu0 0.0
        %744 = vmatpush1.msra.mxu0 %v707
        %745 = vmatprep.subr.mxu0 0.0
        %746 = vmatpush1.msra.mxu0 %v708
        %747 = vmatprep.subr.mxu0 0.0
        %748 = vmatpush1.msra.mxu0 %v709
        %749 = vmatprep.subr.mxu0 0.0
        %750 = vmatpush1.msra.mxu0 0.0
        %751 = vmatprep.subr.mxu0 0.0
        %752 = vmatpush1.msra.mxu0 0.0
        %753 = vmatprep.subr.mxu0 0.0
        %754 = vmatpush1.msra.mxu0 0.0
        %755 = vmatprep.subr.mxu0 0.0
        %756 = vmatpush1.msra.mxu0 0.0
        %757 = vmatprep.subr.mxu0 0.0
        %758 = vmatpush1.msra.mxu0 0.0
        %759 = vmatprep.subr.mxu0 0.0
        %760 = vmatpush1.msra.mxu0 0.0
        %761 = vmatprep.subr.mxu0 0.0
        %762 = vmatpush1.msra.mxu0 0.0
        %763 = vmatprep.subr.mxu0 0.0
        %764 = vmatpush1.msra.mxu0 0.0
        %765 = vmatprep.subr.mxu0 0.0
        %766 = vmatpush1.msra.mxu0 0.0
        %767 = vmatprep.subr.mxu0 0.0
        %768 = vmatpush1.msra.mxu0 0.0
        %769 = vmatprep.subr.mxu0 0.0
        %770 = vmatpush1.msra.mxu0 0.0
        %771 = vmatprep.subr.mxu0 0.0
        %772 = vmatpush1.msra.mxu0 0.0
        %773 = vmatprep.subr.mxu0 0.0
        %774 = vmatpush1.msra.mxu0 0.0
        %775 = vmatprep.subr.mxu0 0.0
        %776 = vmatpush1.msra.mxu0 0.0
        %777 = vmatprep.subr.mxu0 0.0
        %778 = vmatpush1.msra.mxu0 0.0
        %779 = vmatprep.subr.mxu0 0.0
        %780 = vmatpush1.msra.mxu0 0.0
        %781 = vmatprep.mubr.f32.mxu0 0.0
        %782 = vmatmul.mubr.f32.gmra.mrb[0].mxu0 %v693
        %v783 = vpop.f32.mrb[0].mxu0
        %v784 = vadd.f32 %v715, %v783
        %v785 = vpop.f32.mrb[0].mxu0
        %786 = vdwg.mxu0
        %v787 = vtanh.pop %v784
        %788 = vst [vmem:[%s351] sm:$0xff] %v787
        %s789 = sand.u32 %s186, 1
        %s790 = scalar_lea.sflag [#allocation4], %s789
        %s791 = sand.u32 %s186, 1
        %s792 = smul.addr %s791, 8
        %s793 = scalar_lea.vmem [#allocation11], %s792
        // Predicated region
        $region69: #{tpu_custom_call.1} parent=47 // pred_check
          %p794 = pneg %p196
        $region70: #{tpu_custom_call.1} parent=47 // pred_check_branch
          %796 = sbr.rel (%p794) target = $region72
        $region71: #{tpu_custom_call.1} parent=47 // pred_region
          %s798 = ssub.s32 128, 128
          %799 = vsyncadd %s790, %s798
          %s800 = smul.addr %s26, 128
          %s801 = scalar_lea.hbm %s7, %s800
          %s803 = sshll.u32 %s793, 4
          %s804 = int_to_ptr.vmem [resolvable:$true] %s803
          %806 = dma.vmem_to_hbm [thread:$0]  %s804, 128, %s801, %s790
        $region72: #{tpu_custom_call.1} parent=47 // pred_fallthru
          _
      $region48: #{tpu_custom_call.1} parent=5 // pred_fallthru
        _
      %p807 = scmp.le.s32.totalorder 2, %s21
      // Predicated region
      $region73: #{tpu_custom_call.1} parent=5 // pred_check
        %p808 = pneg %p807
      $region74: #{tpu_custom_call.1} parent=5 // pred_check_branch
        %810 = sbr.rel (%p808) target = $region76
      $region75: #{tpu_custom_call.1} parent=5 // pred_region
        %s811 = ssub.s32 %s21, 2
        // Predicated region
        $region77: #{tpu_custom_call.1} parent=75 // pred_check
          %p812 = pneg %p202
        $region78: #{tpu_custom_call.1} parent=75 // pred_check_branch
          %814 = sbr.rel (%p812) target = $region80
        $region79: #{tpu_custom_call.1} parent=75 // pred_region
          %s815 = sand.u32 %s187, 1
          %s816 = scalar_lea.sflag [#allocation4], %s815
          %s817 = sand.u32 %s187, 1
          %s818 = smul.addr %s817, 8
          %s819 = scalar_lea.vmem [#allocation11], %s818
          %820 = dma.done %s816, 128
        $region80: #{tpu_custom_call.1} parent=75 // pred_fallthru
          _
      $region76: #{tpu_custom_call.1} parent=5 // pred_fallthru
        _
    $region6: #{tpu_custom_call.1} parent=1 // loop_footer
      %s25 = sadd.s32 1, %s21
    $region7: #{tpu_custom_call.1} parent=1 // loop_footer_branch
      %20 = sbr.rel target = $region3
    $region8: #{tpu_custom_call.1} parent=1 // loop_exit
      _
    %821 = vsyncpa [#allocation3], 1
    %s822 = scalar_lea.sflag [#allocation3], 1
    %823 = vsyncpa %s822, 1
    %824 = vsyncpa [#allocation6], 1
    %825 = vsyncpa [#allocation9], 1
    %826 = vsyncpa [#allocation4], 1
    %s827 = scalar_lea.sflag [#allocation4], 1
    %828 = vsyncpa %s827, 1

</llo_original>
